<compile_context>
chip_gen: v6e
topology: v6e:2x2x1
jax: 0.10.0
libtpu: 0.0.40
codegen_flags: <defaults>
</compile_context>

<pallas_src>
import functools
import math

import jax
import jax.numpy as jnp
from jax.experimental import pallas as pl
from jax.experimental.pallas import tpu as pltpu


def _layernorm(x, gamma, beta, eps=1e-5):
    mu = jnp.mean(x, axis=-1, keepdims=True)
    var = jnp.mean(jnp.square(x - mu), axis=-1, keepdims=True)
    return (x - mu) * jax.lax.rsqrt(var + eps) * gamma + beta


def se_attention_kernel(q_ref, d_ref, g1_ref, b1_ref, g2_ref, b2_ref,
                        wq_ref, wk_ref, wv_ref, wo_ref, out_ref,
                        *, heads, dim_head, bb, L, M, compute_dtype):
    f32 = jnp.float32

    # Pre-norm in f32, then cast to the MXU compute dtype.
    dn = _layernorm(d_ref[...], g1_ref[...], b1_ref[...]).astype(compute_dtype)  # (bb*M, D)
    qn = _layernorm(q_ref[...], g2_ref[...], b2_ref[...]).astype(compute_dtype)  # (bb*L, D)

    acc = jnp.zeros(out_ref.shape, dtype=f32)  # (bb*L, D) f32 accumulator

    # Static unroll over heads: per-head weights are separate (D, dh)/(dh, D)
    # tensors (split on the host), so there is no unaligned activation slicing,
    # no k.T, and no concat of head outputs.
    for h in range(heads):
        wq_h = wq_ref[h]   # (D, dh)  -- attention scale folded in
        wk_h = wk_ref[h]   # (D, dh)  -- attention scale folded in
        wv_h = wv_ref[h]   # (D, dh)
        wo_h = wo_ref[h]   # (dh, D)

        q_h = jnp.dot(qn, wq_h, preferred_element_type=f32)
        kq_h = jnp.dot(qn, wk_h, preferred_element_type=f32)
        vq_h = jnp.dot(qn, wv_h, preferred_element_type=f32)
        kd_h = jnp.dot(dn, wk_h, preferred_element_type=f32)
        vd_h = jnp.dot(dn, wv_h, preferred_element_type=f32)

        q_h = q_h.reshape(bb, L, dim_head).astype(compute_dtype)
        kq_h = kq_h.reshape(bb, L, dim_head).astype(compute_dtype)
        vq_h = vq_h.reshape(bb, L, dim_head).astype(compute_dtype)
        kd_h = kd_h.reshape(bb, M, dim_head).astype(compute_dtype)
        vd_h = vd_h.reshape(bb, M, dim_head).astype(compute_dtype)

        # Scores against the two halves of the key set [dense_feats ; query];
        # batched over the batch-block dimension, contraction over dim_head.
        # TODO(synk): for production L/M, tile the key axis with an inner
        # "arbitrary" grid axis + online softmax to keep scores out of VMEM.
        s_d = jnp.einsum('bqd,bkd->bqk', q_h, kd_h, preferred_element_type=f32)  # (bb,L,M)
        s_q = jnp.einsum('bqd,bkd->bqk', q_h, kq_h, preferred_element_type=f32)  # (bb,L,L)

        # Split softmax == softmax over the concatenated key axis (f32).
        m = jnp.maximum(jnp.max(s_d, axis=-1, keepdims=True),
                        jnp.max(s_q, axis=-1, keepdims=True))
        p_d = jnp.exp(s_d - m)
        p_q = jnp.exp(s_q - m)
        denom = (jnp.sum(p_d, axis=-1, keepdims=True)
                 + jnp.sum(p_q, axis=-1, keepdims=True))

        o_h = (jnp.einsum('bqk,bkd->bqd', p_d.astype(compute_dtype), vd_h,
                          preferred_element_type=f32)
               + jnp.einsum('bqk,bkd->bqd', p_q.astype(compute_dtype), vq_h,
                            preferred_element_type=f32))
        o_h = o_h * pl.reciprocal(denom, approx=True)       # (bb, L, dh) f32

        # Per-head output projection, summed over heads (== head-concat + to_out).
        acc = acc + jnp.dot(o_h.reshape(bb * L, dim_head).astype(compute_dtype),
                            wo_h, preferred_element_type=f32)

    out_ref[...] = acc.astype(out_ref.dtype)


def _pick_batch_block(batch, cap=8):
    """Largest bb <= cap dividing batch (whole batch in one step if it fits)."""
    bb = min(batch, cap)
    while batch % bb:
        bb -= 1
    return bb


def se_attention(query, dense_feats, params, *, heads, dim_head,
                 compute_dtype=jnp.bfloat16, max_batch_block=8):
    """query: (B, L, D) f32, dense_feats: (B, M, D) f32 -> (B, L, D) f32."""
    B, L, D = query.shape
    _, M, _ = dense_feats.shape
    inner = heads * dim_head

    bb = _pick_batch_block(B, max_batch_block)
    # Flattened row blocks must stay sublane-aligned unless they span everything.
    assert bb == B or ((bb * L) % 8 == 0 and (bb * M) % 8 == 0), \
        "batch block does not give sublane-aligned row blocks"
    grid = (B // bb,)

    scale = 1.0 / math.sqrt(math.sqrt(dim_head))

    wq = params["wq"]                 # (inner, D)
    wkv = params["wkv"]               # (2*inner, D)
    wo = params["wo"]                 # (D, inner)
    wk, wv = wkv[:inner], wkv[inner:]

    # One-time host-side transforms: per-head split, transpose to (D, dh) /
    # (dh, D), fold the attention scale into Wq and Wk, cast to compute dtype.
    wq_h = (wq.reshape(heads, dim_head, D) * scale).transpose(0, 2, 1).astype(compute_dtype)
    wk_h = (wk.reshape(heads, dim_head, D) * scale).transpose(0, 2, 1).astype(compute_dtype)
    wv_h = wv.reshape(heads, dim_head, D).transpose(0, 2, 1).astype(compute_dtype)
    wo_h = wo.reshape(D, heads, dim_head).transpose(1, 2, 0).astype(compute_dtype)

    g1 = params["norm1_w"].reshape(1, D).astype(jnp.float32)
    b1 = params["norm1_b"].reshape(1, D).astype(jnp.float32)
    g2 = params["norm2_w"].reshape(1, D).astype(jnp.float32)
    b2 = params["norm2_b"].reshape(1, D).astype(jnp.float32)

    q_flat = query.reshape(B * L, D)
    d_flat = dense_feats.reshape(B * M, D)

    kernel = functools.partial(se_attention_kernel, heads=heads,
                               dim_head=dim_head, bb=bb, L=L, M=M,
                               compute_dtype=compute_dtype)

    ln_spec = pl.BlockSpec((1, D), lambda i: (0, 0))
    w_spec = pl.BlockSpec((heads, D, dim_head), lambda i: (0, 0, 0))
    wo_spec = pl.BlockSpec((heads, dim_head, D), lambda i: (0, 0, 0))

    out_flat = pl.pallas_call(
        kernel,
        out_shape=jax.ShapeDtypeStruct((B * L, D), query.dtype),
        grid_spec=pltpu.PrefetchScalarGridSpec(
            num_scalar_prefetch=0,
            grid=grid,
            in_specs=[
                pl.BlockSpec((bb * L, D), lambda i: (i, 0)),   # query rows
                pl.BlockSpec((bb * M, D), lambda i: (i, 0)),   # dense rows
                ln_spec, ln_spec,                              # norm1 gamma/beta
                ln_spec, ln_spec,                              # norm2 gamma/beta
                w_spec,                                        # Wq  (heads, D, dh)
                w_spec,                                        # Wk  (heads, D, dh)
                w_spec,                                        # Wv  (heads, D, dh)
                wo_spec,                                       # Wout(heads, dh, D)
            ],
            out_specs=pl.BlockSpec((bb * L, D), lambda i: (i, 0)),
        ),
        compiler_params=pltpu.CompilerParams(
            dimension_semantics=("parallel",)),
    )(q_flat, d_flat, g1, b1, g2, b2, wq_h, wk_h, wv_h, wo_h)

    return out_flat.reshape(B, L, D)


def se_attention_ref(query, dense_feats, params, *, heads, dim_head):
    """Pure-JAX reference mirroring the PyTorch forward (f32)."""
    def ln(x, g, b, eps=1e-5):
        mu = jnp.mean(x, axis=-1, keepdims=True)
        var = jnp.mean(jnp.square(x - mu), axis=-1, keepdims=True)
        return (x - mu) / jnp.sqrt(var + eps) * g + b

    dn = ln(dense_feats, params["norm1_w"], params["norm1_b"])
    qn = ln(query, params["norm2_w"], params["norm2_b"])
    b, l, _ = qn.shape
    q = qn @ params["wq"].T
    kv_in = jnp.concatenate([dn, qn], axis=-2)
    kv = kv_in @ params["wkv"].T
    inner = heads * dim_head
    k, v = kv[..., :inner], kv[..., inner:]

    def split_heads(t):
        return t.reshape(b, -1, heads, dim_head).transpose(0, 2, 1, 3)

    q, k, v = split_heads(q), split_heads(k), split_heads(v)
    scale = 1.0 / math.sqrt(math.sqrt(dim_head))
    attn = jnp.einsum("bhqd,bhkd->bhqk", q * scale, k * scale)
    attn = jax.nn.softmax(attn.astype(jnp.float32), axis=-1).astype(attn.dtype)
    out = jnp.einsum("bhqk,bhkd->bhqd", attn, v)
    out = out.transpose(0, 2, 1, 3).reshape(b, l, -1)
    return out @ params["wo"].T


if __name__ == "__main__":
    # Small shapes consistent with the module's forward.
    B, L, M = 2, 8, 16          # batch, query length, dense-feature length
    dim, dim_head, heads = 32, 16, 2
    inner = dim_head * heads

    key = jax.random.PRNGKey(0)
    k_q, k_d, k_wq, k_wkv, k_wo, k_g1, k_b1, k_g2, k_b2 = jax.random.split(key, 9)

    query = jax.random.normal(k_q, (B, L, dim), dtype=jnp.float32)
    dense_feats = jax.random.normal(k_d, (B, M, dim), dtype=jnp.float32)

    params = {
        "wq":  jax.random.normal(k_wq,  (inner, dim), dtype=jnp.float32) * 0.1,
        "wkv": jax.random.normal(k_wkv, (2 * inner, dim), dtype=jnp.float32) * 0.1,
        "wo":  jax.random.normal(k_wo,  (dim, inner), dtype=jnp.float32) * 0.1,
        "norm1_w": 1.0 + 0.05 * jax.random.normal(k_g1, (dim,), dtype=jnp.float32),
        "norm1_b": 0.05 * jax.random.normal(k_b1, (dim,), dtype=jnp.float32),
        "norm2_w": 1.0 + 0.05 * jax.random.normal(k_g2, (dim,), dtype=jnp.float32),
        "norm2_b": 0.05 * jax.random.normal(k_b2, (dim,), dtype=jnp.float32),
    }

    ref = se_attention_ref(query, dense_feats, params, heads=heads, dim_head=dim_head)

    # Full-precision path: validates the kernel math tightly.
    out_f32 = se_attention(query, dense_feats, params, heads=heads,
                           dim_head=dim_head, compute_dtype=jnp.float32)
    out_f32 = jax.block_until_ready(out_f32)
    assert out_f32.shape == (B, L, dim)
    assert jnp.allclose(out_f32, ref, atol=2e-3, rtol=2e-3), "f32 kernel mismatch vs reference"

    # Default bf16-MXU path (recommended on v6e/v7x): looser tolerance.
    out_bf16 = se_attention(query, dense_feats, params, heads=heads, dim_head=dim_head)
    out_bf16 = jax.block_until_ready(out_bf16)
    assert out_bf16.shape == (B, L, dim)
    assert jnp.allclose(out_bf16, ref, atol=5e-2, rtol=5e-2), "bf16 kernel mismatch vs reference"

    print("KERNEL_OK")
</pallas_src>

<mosaic_0001>
module attributes {stable_mosaic.version = 11 : i64} {
  func.func @se_attention_kernel(%arg0: i32, %arg1: memref<16x32xf32, #tpu.memory_space<vmem>>, %arg2: memref<32x32xf32, #tpu.memory_space<vmem>>, %arg3: memref<1x32xf32, #tpu.memory_space<vmem>>, %arg4: memref<1x32xf32, #tpu.memory_space<vmem>>, %arg5: memref<1x32xf32, #tpu.memory_space<vmem>>, %arg6: memref<1x32xf32, #tpu.memory_space<vmem>>, %arg7: memref<2x32x16xf32, #tpu.memory_space<vmem>>, %arg8: memref<2x32x16xf32, #tpu.memory_space<vmem>>, %arg9: memref<2x32x16xf32, #tpu.memory_space<vmem>>, %arg10: memref<2x16x32xf32, #tpu.memory_space<vmem>>, %arg11: memref<16x32xf32, #tpu.memory_space<vmem>>) attributes {dimension_semantics = [#tpu.dimension_semantics<parallel>], iteration_bounds = array<i64: 1>, scalar_prefetch = 0 : i64, scratch_operands = 0 : i64, tpu.core_type = #tpu.core_type<tc>, window_params = [{transform_indices = @transform_0, window_bounds = array<i64: 16, 32>}, {transform_indices = @transform_1, window_bounds = array<i64: 32, 32>}, {pipeline_mode = #tpu.pipeline_mode<synchronous>, transform_indices = @transform_2, window_bounds = array<i64: 1, 32>}, {pipeline_mode = #tpu.pipeline_mode<synchronous>, transform_indices = @transform_3, window_bounds = array<i64: 1, 32>}, {pipeline_mode = #tpu.pipeline_mode<synchronous>, transform_indices = @transform_4, window_bounds = array<i64: 1, 32>}, {pipeline_mode = #tpu.pipeline_mode<synchronous>, transform_indices = @transform_5, window_bounds = array<i64: 1, 32>}, {pipeline_mode = #tpu.pipeline_mode<synchronous>, transform_indices = @transform_6, window_bounds = array<i64: 2, 32, 16>}, {pipeline_mode = #tpu.pipeline_mode<synchronous>, transform_indices = @transform_7, window_bounds = array<i64: 2, 32, 16>}, {pipeline_mode = #tpu.pipeline_mode<synchronous>, transform_indices = @transform_8, window_bounds = array<i64: 2, 32, 16>}, {pipeline_mode = #tpu.pipeline_mode<synchronous>, transform_indices = @transform_9, window_bounds = array<i64: 2, 16, 32>}, {transform_indices = @transform_10, window_bounds = array<i64: 16, 32>}]} {
    %c0 = arith.constant 0 : index
    %c0_0 = arith.constant 0 : index
    %0 = vector.load %arg2[%c0, %c0_0] : memref<32x32xf32, #tpu.memory_space<vmem>>, vector<32x32xf32>
    %c0_1 = arith.constant 0 : index
    %c0_2 = arith.constant 0 : index
    %1 = vector.load %arg3[%c0_1, %c0_2] : memref<1x32xf32, #tpu.memory_space<vmem>>, vector<1x32xf32>
    %c0_3 = arith.constant 0 : index
    %c0_4 = arith.constant 0 : index
    %2 = vector.load %arg4[%c0_3, %c0_4] : memref<1x32xf32, #tpu.memory_space<vmem>>, vector<1x32xf32>
    %cst = arith.constant dense<0.000000e+00> : vector<32xf32>
    %3 = vector.multi_reduction <add>, %0, %cst [1] : vector<32x32xf32> to vector<32xf32>
    %4 = vector.shape_cast %3 : vector<32xf32> to vector<32x1xf32>
    %cst_5 = arith.constant 3.200000e+01 : f32
    %5 = vector.broadcast %cst_5 : f32 to vector<32x1xf32>
    %6 = arith.divf %4, %5 : vector<32x1xf32>
    %7 = vector.broadcast %6 : vector<32x1xf32> to vector<32x32xf32>
    %8 = arith.subf %0, %7 : vector<32x32xf32>
    %9 = arith.mulf %8, %8 : vector<32x32xf32>
    %cst_6 = arith.constant dense<0.000000e+00> : vector<32xf32>
    %10 = vector.multi_reduction <add>, %9, %cst_6 [1] : vector<32x32xf32> to vector<32xf32>
    %11 = vector.shape_cast %10 : vector<32xf32> to vector<32x1xf32>
    %cst_7 = arith.constant 3.200000e+01 : f32
    %12 = vector.broadcast %cst_7 : f32 to vector<32x1xf32>
    %13 = arith.divf %11, %12 : vector<32x1xf32>
    %14 = vector.broadcast %6 : vector<32x1xf32> to vector<32x32xf32>
    %15 = arith.subf %0, %14 : vector<32x32xf32>
    %cst_8 = arith.constant 9.99999974E-6 : f32
    %16 = vector.broadcast %cst_8 : f32 to vector<32x1xf32>
    %17 = arith.addf %13, %16 : vector<32x1xf32>
    %18 = math.rsqrt %17 : vector<32x1xf32>
    %19 = vector.broadcast %18 : vector<32x1xf32> to vector<32x32xf32>
    %20 = arith.mulf %15, %19 : vector<32x32xf32>
    %21 = vector.broadcast %1 : vector<1x32xf32> to vector<32x32xf32>
    %22 = arith.mulf %20, %21 : vector<32x32xf32>
    %23 = vector.broadcast %2 : vector<1x32xf32> to vector<32x32xf32>
    %24 = arith.addf %22, %23 : vector<32x32xf32>
    %c0_9 = arith.constant 0 : index
    %c0_10 = arith.constant 0 : index
    %25 = vector.load %arg1[%c0_9, %c0_10] : memref<16x32xf32, #tpu.memory_space<vmem>>, vector<16x32xf32>
    %c0_11 = arith.constant 0 : index
    %c0_12 = arith.constant 0 : index
    %26 = vector.load %arg5[%c0_11, %c0_12] : memref<1x32xf32, #tpu.memory_space<vmem>>, vector<1x32xf32>
    %c0_13 = arith.constant 0 : index
    %c0_14 = arith.constant 0 : index
    %27 = vector.load %arg6[%c0_13, %c0_14] : memref<1x32xf32, #tpu.memory_space<vmem>>, vector<1x32xf32>
    %cst_15 = arith.constant dense<0.000000e+00> : vector<16xf32>
    %28 = vector.multi_reduction <add>, %25, %cst_15 [1] : vector<16x32xf32> to vector<16xf32>
    %29 = vector.shape_cast %28 : vector<16xf32> to vector<16x1xf32>
    %cst_16 = arith.constant 3.200000e+01 : f32
    %30 = vector.broadcast %cst_16 : f32 to vector<16x1xf32>
    %31 = arith.divf %29, %30 : vector<16x1xf32>
    %32 = vector.broadcast %31 : vector<16x1xf32> to vector<16x32xf32>
    %33 = arith.subf %25, %32 : vector<16x32xf32>
    %34 = arith.mulf %33, %33 : vector<16x32xf32>
    %cst_17 = arith.constant dense<0.000000e+00> : vector<16xf32>
    %35 = vector.multi_reduction <add>, %34, %cst_17 [1] : vector<16x32xf32> to vector<16xf32>
    %36 = vector.shape_cast %35 : vector<16xf32> to vector<16x1xf32>
    %cst_18 = arith.constant 3.200000e+01 : f32
    %37 = vector.broadcast %cst_18 : f32 to vector<16x1xf32>
    %38 = arith.divf %36, %37 : vector<16x1xf32>
    %39 = vector.broadcast %31 : vector<16x1xf32> to vector<16x32xf32>
    %40 = arith.subf %25, %39 : vector<16x32xf32>
    %cst_19 = arith.constant 9.99999974E-6 : f32
    %41 = vector.broadcast %cst_19 : f32 to vector<16x1xf32>
    %42 = arith.addf %38, %41 : vector<16x1xf32>
    %43 = math.rsqrt %42 : vector<16x1xf32>
    %44 = vector.broadcast %43 : vector<16x1xf32> to vector<16x32xf32>
    %45 = arith.mulf %40, %44 : vector<16x32xf32>
    %46 = vector.broadcast %26 : vector<1x32xf32> to vector<16x32xf32>
    %47 = arith.mulf %45, %46 : vector<16x32xf32>
    %48 = vector.broadcast %27 : vector<1x32xf32> to vector<16x32xf32>
    %49 = arith.addf %47, %48 : vector<16x32xf32>
    %cst_20 = arith.constant 0.000000e+00 : f32
    %50 = vector.broadcast %cst_20 : f32 to vector<16x32xf32>
    %c0_21 = arith.constant 0 : index
    %c0_22 = arith.constant 0 : index
    %c0_23 = arith.constant 0 : index
    %51 = vector.load %arg7[%c0_21, %c0_22, %c0_23] : memref<2x32x16xf32, #tpu.memory_space<vmem>>, vector<1x32x16xf32>
    %52 = vector.shape_cast %51 : vector<1x32x16xf32> to vector<32x16xf32>
    %c0_24 = arith.constant 0 : index
    %c0_25 = arith.constant 0 : index
    %c0_26 = arith.constant 0 : index
    %53 = vector.load %arg8[%c0_24, %c0_25, %c0_26] : memref<2x32x16xf32, #tpu.memory_space<vmem>>, vector<1x32x16xf32>
    %54 = vector.shape_cast %53 : vector<1x32x16xf32> to vector<32x16xf32>
    %c0_27 = arith.constant 0 : index
    %c0_28 = arith.constant 0 : index
    %c0_29 = arith.constant 0 : index
    %55 = vector.load %arg9[%c0_27, %c0_28, %c0_29] : memref<2x32x16xf32, #tpu.memory_space<vmem>>, vector<1x32x16xf32>
    %56 = vector.shape_cast %55 : vector<1x32x16xf32> to vector<32x16xf32>
    %c0_30 = arith.constant 0 : index
    %c0_31 = arith.constant 0 : index
    %c0_32 = arith.constant 0 : index
    %57 = vector.load %arg10[%c0_30, %c0_31, %c0_32] : memref<2x16x32xf32, #tpu.memory_space<vmem>>, vector<1x16x32xf32>
    %58 = vector.shape_cast %57 : vector<1x16x32xf32> to vector<16x32xf32>
    %cst_33 = arith.constant dense<0.000000e+00> : vector<16x16xf32>
    %59 = tpu.matmul %49, %52, %cst_33 {dimension_numbers = #tpu.dot_dimension_numbers<[1], [0], [0], [1], [0, 0, 1, 1], [], []>} : vector<16x32xf32>, vector<32x16xf32>, vector<16x16xf32> -> vector<16x16xf32>
    %cst_34 = arith.constant dense<0.000000e+00> : vector<16x16xf32>
    %60 = tpu.matmul %49, %54, %cst_34 {dimension_numbers = #tpu.dot_dimension_numbers<[1], [0], [0], [1], [0, 0, 1, 1], [], []>} : vector<16x32xf32>, vector<32x16xf32>, vector<16x16xf32> -> vector<16x16xf32>
    %cst_35 = arith.constant dense<0.000000e+00> : vector<16x16xf32>
    %61 = tpu.matmul %49, %56, %cst_35 {dimension_numbers = #tpu.dot_dimension_numbers<[1], [0], [0], [1], [0, 0, 1, 1], [], []>} : vector<16x32xf32>, vector<32x16xf32>, vector<16x16xf32> -> vector<16x16xf32>
    %cst_36 = arith.constant dense<0.000000e+00> : vector<32x16xf32>
    %62 = tpu.matmul %24, %54, %cst_36 {dimension_numbers = #tpu.dot_dimension_numbers<[1], [0], [0], [1], [0, 0, 1, 1], [], []>} : vector<32x32xf32>, vector<32x16xf32>, vector<32x16xf32> -> vector<32x16xf32>
    %cst_37 = arith.constant dense<0.000000e+00> : vector<32x16xf32>
    %63 = tpu.matmul %24, %56, %cst_37 {dimension_numbers = #tpu.dot_dimension_numbers<[1], [0], [0], [1], [0, 0, 1, 1], [], []>} : vector<32x32xf32>, vector<32x16xf32>, vector<32x16xf32> -> vector<32x16xf32>
    %64 = vector.shape_cast %59 : vector<16x16xf32> to vector<2x8x16xf32>
    %65 = vector.shape_cast %60 : vector<16x16xf32> to vector<2x8x16xf32>
    %66 = vector.shape_cast %61 : vector<16x16xf32> to vector<2x8x16xf32>
    %67 = vector.shape_cast %62 : vector<32x16xf32> to vector<2x16x16xf32>
    %68 = vector.shape_cast %63 : vector<32x16xf32> to vector<2x16x16xf32>
    "tpu.trace_start"() <{level = 10 : i32, message = "bqd,bkd->bqk"}> : () -> ()
    %cst_38 = arith.constant dense<0.000000e+00> : vector<2x8x16xf32>
    %69 = tpu.matmul %64, %67, %cst_38 {dimension_numbers = #tpu.dot_dimension_numbers<[2], [2], [1], [1], [0, 0, 0, 1, 1, 1], [0], [0]>} : vector<2x8x16xf32>, vector<2x16x16xf32>, vector<2x8x16xf32> -> vector<2x8x16xf32>
    %cst_39 = arith.constant dense<0.000000e+00> : vector<2x8x8xf32>
    %70 = tpu.matmul %64, %65, %cst_39 {dimension_numbers = #tpu.dot_dimension_numbers<[2], [2], [1], [1], [0, 0, 0, 1, 1, 1], [0], [0]>} : vector<2x8x16xf32>, vector<2x8x16xf32>, vector<2x8x8xf32> -> vector<2x8x8xf32>
    "tpu.trace_stop"() : () -> ()
    %cst_40 = arith.constant dense<0xFF800000> : vector<2x8xf32>
    %71 = vector.multi_reduction <maximumf>, %69, %cst_40 [2] : vector<2x8x16xf32> to vector<2x8xf32>
    %72 = vector.shape_cast %71 : vector<2x8xf32> to vector<2x8x1xf32>
    %cst_41 = arith.constant dense<0xFF800000> : vector<2x8xf32>
    %73 = vector.multi_reduction <maximumf>, %70, %cst_41 [2] : vector<2x8x8xf32> to vector<2x8xf32>
    %74 = vector.shape_cast %73 : vector<2x8xf32> to vector<2x8x1xf32>
    %75 = arith.maximumf %72, %74 : vector<2x8x1xf32>
    %76 = vector.broadcast %75 : vector<2x8x1xf32> to vector<2x8x16xf32>
    %77 = arith.subf %69, %76 : vector<2x8x16xf32>
    %78 = math.exp %77 : vector<2x8x16xf32>
    %79 = vector.broadcast %75 : vector<2x8x1xf32> to vector<2x8x8xf32>
    %80 = arith.subf %70, %79 : vector<2x8x8xf32>
    %81 = math.exp %80 : vector<2x8x8xf32>
    %cst_42 = arith.constant dense<0.000000e+00> : vector<2x8xf32>
    %82 = vector.multi_reduction <add>, %78, %cst_42 [2] : vector<2x8x16xf32> to vector<2x8xf32>
    %83 = vector.shape_cast %82 : vector<2x8xf32> to vector<2x8x1xf32>
    %cst_43 = arith.constant dense<0.000000e+00> : vector<2x8xf32>
    %84 = vector.multi_reduction <add>, %81, %cst_43 [2] : vector<2x8x8xf32> to vector<2x8xf32>
    %85 = vector.shape_cast %84 : vector<2x8xf32> to vector<2x8x1xf32>
    %86 = arith.addf %83, %85 : vector<2x8x1xf32>
    "tpu.trace_start"() <{level = 10 : i32, message = "bqk,bkd->bqd"}> : () -> ()
    %cst_44 = arith.constant dense<0.000000e+00> : vector<2x8x16xf32>
    %87 = tpu.matmul %78, %68, %cst_44 {dimension_numbers = #tpu.dot_dimension_numbers<[2], [1], [1], [2], [0, 0, 0, 1, 1, 2], [0], [0]>} : vector<2x8x16xf32>, vector<2x16x16xf32>, vector<2x8x16xf32> -> vector<2x8x16xf32>
    %cst_45 = arith.constant dense<0.000000e+00> : vector<2x8x16xf32>
    %88 = tpu.matmul %81, %66, %cst_45 {dimension_numbers = #tpu.dot_dimension_numbers<[2], [1], [1], [2], [0, 0, 0, 1, 1, 2], [0], [0]>} : vector<2x8x8xf32>, vector<2x8x16xf32>, vector<2x8x16xf32> -> vector<2x8x16xf32>
    "tpu.trace_stop"() : () -> ()
    %89 = arith.addf %87, %88 : vector<2x8x16xf32>
    %90 = tpu.reciprocal %86 {approx = true} : vector<2x8x1xf32> -> vector<2x8x1xf32>
    %91 = vector.broadcast %90 : vector<2x8x1xf32> to vector<2x8x16xf32>
    %92 = arith.mulf %89, %91 : vector<2x8x16xf32>
    %93 = vector.shape_cast %92 : vector<2x8x16xf32> to vector<16x16xf32>
    %cst_46 = arith.constant dense<0.000000e+00> : vector<16x32xf32>
    %94 = tpu.matmul %93, %58, %cst_46 {dimension_numbers = #tpu.dot_dimension_numbers<[1], [0], [0], [1], [0, 0, 1, 1], [], []>} : vector<16x16xf32>, vector<16x32xf32>, vector<16x32xf32> -> vector<16x32xf32>
    %95 = arith.addf %50, %94 : vector<16x32xf32>
    %c1 = arith.constant 1 : index
    %c0_47 = arith.constant 0 : index
    %c0_48 = arith.constant 0 : index
    %96 = vector.load %arg7[%c1, %c0_47, %c0_48] : memref<2x32x16xf32, #tpu.memory_space<vmem>>, vector<1x32x16xf32>
    %97 = vector.shape_cast %96 : vector<1x32x16xf32> to vector<32x16xf32>
    %c1_49 = arith.constant 1 : index
    %c0_50 = arith.constant 0 : index
    %c0_51 = arith.constant 0 : index
    %98 = vector.load %arg8[%c1_49, %c0_50, %c0_51] : memref<2x32x16xf32, #tpu.memory_space<vmem>>, vector<1x32x16xf32>
    %99 = vector.shape_cast %98 : vector<1x32x16xf32> to vector<32x16xf32>
    %c1_52 = arith.constant 1 : index
    %c0_53 = arith.constant 0 : index
    %c0_54 = arith.constant 0 : index
    %100 = vector.load %arg9[%c1_52, %c0_53, %c0_54] : memref<2x32x16xf32, #tpu.memory_space<vmem>>, vector<1x32x16xf32>
    %101 = vector.shape_cast %100 : vector<1x32x16xf32> to vector<32x16xf32>
    %c1_55 = arith.constant 1 : index
    %c0_56 = arith.constant 0 : index
    %c0_57 = arith.constant 0 : index
    %102 = vector.load %arg10[%c1_55, %c0_56, %c0_57] : memref<2x16x32xf32, #tpu.memory_space<vmem>>, vector<1x16x32xf32>
    %103 = vector.shape_cast %102 : vector<1x16x32xf32> to vector<16x32xf32>
    %cst_58 = arith.constant dense<0.000000e+00> : vector<16x16xf32>
    %104 = tpu.matmul %49, %97, %cst_58 {dimension_numbers = #tpu.dot_dimension_numbers<[1], [0], [0], [1], [0, 0, 1, 1], [], []>} : vector<16x32xf32>, vector<32x16xf32>, vector<16x16xf32> -> vector<16x16xf32>
    %cst_59 = arith.constant dense<0.000000e+00> : vector<16x16xf32>
    %105 = tpu.matmul %49, %99, %cst_59 {dimension_numbers = #tpu.dot_dimension_numbers<[1], [0], [0], [1], [0, 0, 1, 1], [], []>} : vector<16x32xf32>, vector<32x16xf32>, vector<16x16xf32> -> vector<16x16xf32>
    %cst_60 = arith.constant dense<0.000000e+00> : vector<16x16xf32>
    %106 = tpu.matmul %49, %101, %cst_60 {dimension_numbers = #tpu.dot_dimension_numbers<[1], [0], [0], [1], [0, 0, 1, 1], [], []>} : vector<16x32xf32>, vector<32x16xf32>, vector<16x16xf32> -> vector<16x16xf32>
    %cst_61 = arith.constant dense<0.000000e+00> : vector<32x16xf32>
    %107 = tpu.matmul %24, %99, %cst_61 {dimension_numbers = #tpu.dot_dimension_numbers<[1], [0], [0], [1], [0, 0, 1, 1], [], []>} : vector<32x32xf32>, vector<32x16xf32>, vector<32x16xf32> -> vector<32x16xf32>
    %cst_62 = arith.constant dense<0.000000e+00> : vector<32x16xf32>
    %108 = tpu.matmul %24, %101, %cst_62 {dimension_numbers = #tpu.dot_dimension_numbers<[1], [0], [0], [1], [0, 0, 1, 1], [], []>} : vector<32x32xf32>, vector<32x16xf32>, vector<32x16xf32> -> vector<32x16xf32>
    %109 = vector.shape_cast %104 : vector<16x16xf32> to vector<2x8x16xf32>
    %110 = vector.shape_cast %105 : vector<16x16xf32> to vector<2x8x16xf32>
    %111 = vector.shape_cast %106 : vector<16x16xf32> to vector<2x8x16xf32>
    %112 = vector.shape_cast %107 : vector<32x16xf32> to vector<2x16x16xf32>
    %113 = vector.shape_cast %108 : vector<32x16xf32> to vector<2x16x16xf32>
    "tpu.trace_start"() <{level = 10 : i32, message = "bqd,bkd->bqk"}> : () -> ()
    %cst_63 = arith.constant dense<0.000000e+00> : vector<2x8x16xf32>
    %114 = tpu.matmul %109, %112, %cst_63 {dimension_numbers = #tpu.dot_dimension_numbers<[2], [2], [1], [1], [0, 0, 0, 1, 1, 1], [0], [0]>} : vector<2x8x16xf32>, vector<2x16x16xf32>, vector<2x8x16xf32> -> vector<2x8x16xf32>
    %cst_64 = arith.constant dense<0.000000e+00> : vector<2x8x8xf32>
    %115 = tpu.matmul %109, %110, %cst_64 {dimension_numbers = #tpu.dot_dimension_numbers<[2], [2], [1], [1], [0, 0, 0, 1, 1, 1], [0], [0]>} : vector<2x8x16xf32>, vector<2x8x16xf32>, vector<2x8x8xf32> -> vector<2x8x8xf32>
    "tpu.trace_stop"() : () -> ()
    %cst_65 = arith.constant dense<0xFF800000> : vector<2x8xf32>
    %116 = vector.multi_reduction <maximumf>, %114, %cst_65 [2] : vector<2x8x16xf32> to vector<2x8xf32>
    %117 = vector.shape_cast %116 : vector<2x8xf32> to vector<2x8x1xf32>
    %cst_66 = arith.constant dense<0xFF800000> : vector<2x8xf32>
    %118 = vector.multi_reduction <maximumf>, %115, %cst_66 [2] : vector<2x8x8xf32> to vector<2x8xf32>
    %119 = vector.shape_cast %118 : vector<2x8xf32> to vector<2x8x1xf32>
    %120 = arith.maximumf %117, %119 : vector<2x8x1xf32>
    %121 = vector.broadcast %120 : vector<2x8x1xf32> to vector<2x8x16xf32>
    %122 = arith.subf %114, %121 : vector<2x8x16xf32>
    %123 = math.exp %122 : vector<2x8x16xf32>
    %124 = vector.broadcast %120 : vector<2x8x1xf32> to vector<2x8x8xf32>
    %125 = arith.subf %115, %124 : vector<2x8x8xf32>
    %126 = math.exp %125 : vector<2x8x8xf32>
    %cst_67 = arith.constant dense<0.000000e+00> : vector<2x8xf32>
    %127 = vector.multi_reduction <add>, %123, %cst_67 [2] : vector<2x8x16xf32> to vector<2x8xf32>
    %128 = vector.shape_cast %127 : vector<2x8xf32> to vector<2x8x1xf32>
    %cst_68 = arith.constant dense<0.000000e+00> : vector<2x8xf32>
    %129 = vector.multi_reduction <add>, %126, %cst_68 [2] : vector<2x8x8xf32> to vector<2x8xf32>
    %130 = vector.shape_cast %129 : vector<2x8xf32> to vector<2x8x1xf32>
    %131 = arith.addf %128, %130 : vector<2x8x1xf32>
    "tpu.trace_start"() <{level = 10 : i32, message = "bqk,bkd->bqd"}> : () -> ()
    %cst_69 = arith.constant dense<0.000000e+00> : vector<2x8x16xf32>
    %132 = tpu.matmul %123, %113, %cst_69 {dimension_numbers = #tpu.dot_dimension_numbers<[2], [1], [1], [2], [0, 0, 0, 1, 1, 2], [0], [0]>} : vector<2x8x16xf32>, vector<2x16x16xf32>, vector<2x8x16xf32> -> vector<2x8x16xf32>
    %cst_70 = arith.constant dense<0.000000e+00> : vector<2x8x16xf32>
    %133 = tpu.matmul %126, %111, %cst_70 {dimension_numbers = #tpu.dot_dimension_numbers<[2], [1], [1], [2], [0, 0, 0, 1, 1, 2], [0], [0]>} : vector<2x8x8xf32>, vector<2x8x16xf32>, vector<2x8x16xf32> -> vector<2x8x16xf32>
    "tpu.trace_stop"() : () -> ()
    %134 = arith.addf %132, %133 : vector<2x8x16xf32>
    %135 = tpu.reciprocal %131 {approx = true} : vector<2x8x1xf32> -> vector<2x8x1xf32>
    %136 = vector.broadcast %135 : vector<2x8x1xf32> to vector<2x8x16xf32>
    %137 = arith.mulf %134, %136 : vector<2x8x16xf32>
    %138 = vector.shape_cast %137 : vector<2x8x16xf32> to vector<16x16xf32>
    %cst_71 = arith.constant dense<0.000000e+00> : vector<16x32xf32>
    %139 = tpu.matmul %138, %103, %cst_71 {dimension_numbers = #tpu.dot_dimension_numbers<[1], [0], [0], [1], [0, 0, 1, 1], [], []>} : vector<16x16xf32>, vector<16x32xf32>, vector<16x32xf32> -> vector<16x32xf32>
    %140 = arith.addf %95, %139 : vector<16x32xf32>
    %c0_72 = arith.constant 0 : index
    %c0_73 = arith.constant 0 : index
    %141 = vector.load %arg11[%c0_72, %c0_73] : memref<16x32xf32, #tpu.memory_space<vmem>>, vector<16x32xf32>
    tpu.vector_store %arg11[%c0_72, %c0_73], %140 {strides = array<i32>} : memref<16x32xf32, #tpu.memory_space<vmem>>, vector<16x32xf32>,
    return
  }
  func.func @transform_0(%arg0: i32) -> (i32, i32) {
    %c0_i32 = arith.constant 0 : i32
    %c0_i32_0 = arith.constant 0 : i32
    return %arg0, %c0_i32 : i32, i32
  }
  func.func @transform_1(%arg0: i32) -> (i32, i32) {
    %c0_i32 = arith.constant 0 : i32
    %c0_i32_0 = arith.constant 0 : i32
    return %arg0, %c0_i32 : i32, i32
  }
  func.func @transform_2(%arg0: i32) -> (i32, i32) {
    %c0_i32 = arith.constant 0 : i32
    %c0_i32_0 = arith.constant 0 : i32
    %c0_i32_1 = arith.constant 0 : i32
    return %c0_i32, %c0_i32_0 : i32, i32
  }
  func.func @transform_3(%arg0: i32) -> (i32, i32) {
    %c0_i32 = arith.constant 0 : i32
    %c0_i32_0 = arith.constant 0 : i32
    %c0_i32_1 = arith.constant 0 : i32
    return %c0_i32, %c0_i32_0 : i32, i32
  }
  func.func @transform_4(%arg0: i32) -> (i32, i32) {
    %c0_i32 = arith.constant 0 : i32
    %c0_i32_0 = arith.constant 0 : i32
    %c0_i32_1 = arith.constant 0 : i32
    return %c0_i32, %c0_i32_0 : i32, i32
  }
  func.func @transform_5(%arg0: i32) -> (i32, i32) {
    %c0_i32 = arith.constant 0 : i32
    %c0_i32_0 = arith.constant 0 : i32
    %c0_i32_1 = arith.constant 0 : i32
    return %c0_i32, %c0_i32_0 : i32, i32
  }
  func.func @transform_6(%arg0: i32) -> (i32, i32, i32) {
    %c0_i32 = arith.constant 0 : i32
    %c0_i32_0 = arith.constant 0 : i32
    %c0_i32_1 = arith.constant 0 : i32
    %c0_i32_2 = arith.constant 0 : i32
    return %c0_i32, %c0_i32_0, %c0_i32_1 : i32, i32, i32
  }
  func.func @transform_7(%arg0: i32) -> (i32, i32, i32) {
    %c0_i32 = arith.constant 0 : i32
    %c0_i32_0 = arith.constant 0 : i32
    %c0_i32_1 = arith.constant 0 : i32
    %c0_i32_2 = arith.constant 0 : i32
    return %c0_i32, %c0_i32_0, %c0_i32_1 : i32, i32, i32
  }
  func.func @transform_8(%arg0: i32) -> (i32, i32, i32) {
    %c0_i32 = arith.constant 0 : i32
    %c0_i32_0 = arith.constant 0 : i32
    %c0_i32_1 = arith.constant 0 : i32
    %c0_i32_2 = arith.constant 0 : i32
    return %c0_i32, %c0_i32_0, %c0_i32_1 : i32, i32, i32
  }
  func.func @transform_9(%arg0: i32) -> (i32, i32, i32) {
    %c0_i32 = arith.constant 0 : i32
    %c0_i32_0 = arith.constant 0 : i32
    %c0_i32_1 = arith.constant 0 : i32
    %c0_i32_2 = arith.constant 0 : i32
    return %c0_i32, %c0_i32_0, %c0_i32_1 : i32, i32, i32
  }
  func.func @transform_10(%arg0: i32) -> (i32, i32) {
    %c0_i32 = arith.constant 0 : i32
    %c0_i32_0 = arith.constant 0 : i32
    return %arg0, %c0_i32 : i32, i32
  }
}

</mosaic_0001>

<llo_original>
// kernel: tpu_custom_call.1
$region0: #{tpu_custom_call.1}
  #allocation0 [shape = 'u32[]', space=smem, size = 0x4, offset = 0x4, fixed_abs, tag = 'smem constant byte address 0x4 - core index']
  #allocation1 [shape = 'u32[144,128]{1,0:T(1,128)}', space=vmem, size = 0x12000, scoped, tag = 'internal scratch']
  %s0 = inlined_call_operand.vmem [shape: f32[16,32], index: 0, kind: input, shape index: {}]
  %s1 = inlined_call_operand.vmem [shape: f32[32,32], index: 1, kind: input, shape index: {}]
  %s2 = inlined_call_operand.vmem [shape: f32[1,32], index: 2, kind: input, shape index: {}]
  %s3 = inlined_call_operand.vmem [shape: f32[1,32], index: 3, kind: input, shape index: {}]
  %s4 = inlined_call_operand.vmem [shape: f32[1,32], index: 4, kind: input, shape index: {}]
  %s5 = inlined_call_operand.vmem [shape: f32[1,32], index: 5, kind: input, shape index: {}]
  %s6 = inlined_call_operand.vmem [shape: f32[2,32,16], index: 6, kind: input, shape index: {}]
  %s7 = inlined_call_operand.vmem [shape: f32[2,32,16], index: 7, kind: input, shape index: {}]
  %s8 = inlined_call_operand.vmem [shape: f32[2,32,16], index: 8, kind: input, shape index: {}]
  %s9 = inlined_call_operand.vmem [shape: f32[2,16,32], index: 9, kind: input, shape index: {}]
  %s10 = inlined_call_operand.hbm [shape: f32[16,32], index: 10, kind: output, shape index: {}]
  %s11 = sld [smem:[#allocation0]]
  $region50: #{tpu_custom_call.1} parent=0
    _
  %s13 = ssub.s32 1, %s11
  %s14 = scalar_select 0, %s13, %s11
  $region1: #{tpu_custom_call.1} parent=0
    #allocation2 [shape = 'u8[8192]{0}', space=vmem, size = 0x2000, scoped, tag = 'output window, operand 0, single buffered']
    #allocation3 [shape = 's32[1]{0}', space=sflag, size = 0x4, scoped, tag = 'scoped memory for tpu_custom_call.1']
    %15 = vsyncpa [#allocation3], 0
    // Predicated region
    $region2: #{tpu_custom_call.1} parent=1 // pred_check
      _
    $region3: #{tpu_custom_call.1} parent=1 // pred_check_branch
      %17 = sbr.rel (0) target = $region5
    $region4: #{tpu_custom_call.1} parent=1 // pred_region
      _
    $region5: #{tpu_custom_call.1} parent=1 // pred_fallthru
      _
    // Predicated region
    $region6: #{tpu_custom_call.1} parent=1 // pred_check
      _
    $region7: #{tpu_custom_call.1} parent=1 // pred_check_branch
      %19 = sbr.rel (0) target = $region9
    $region8: #{tpu_custom_call.1} parent=1 // pred_region
      _
    $region9: #{tpu_custom_call.1} parent=1 // pred_fallthru
      _
    // Predicated region
    $region10: #{tpu_custom_call.1} parent=1 // pred_check
      _
    $region11: #{tpu_custom_call.1} parent=1 // pred_check_branch
      %21 = sbr.rel (0) target = $region13
    $region12: #{tpu_custom_call.1} parent=1 // pred_region
      _
    $region13: #{tpu_custom_call.1} parent=1 // pred_fallthru
      _
    // Predicated region
    $region14: #{tpu_custom_call.1} parent=1 // pred_check
      _
    $region15: #{tpu_custom_call.1} parent=1 // pred_check_branch
      %23 = sbr.rel (0) target = $region17
    $region16: #{tpu_custom_call.1} parent=1 // pred_region
      _
    $region17: #{tpu_custom_call.1} parent=1 // pred_fallthru
      _
    // Predicated region
    $region18: #{tpu_custom_call.1} parent=1 // pred_check
      _
    $region19: #{tpu_custom_call.1} parent=1 // pred_check_branch
      %25 = sbr.rel (0) target = $region21
    $region20: #{tpu_custom_call.1} parent=1 // pred_region
      _
    $region21: #{tpu_custom_call.1} parent=1 // pred_fallthru
      _
    // Predicated region
    $region22: #{tpu_custom_call.1} parent=1 // pred_check
      _
    $region23: #{tpu_custom_call.1} parent=1 // pred_check_branch
      %27 = sbr.rel (0) target = $region25
    $region24: #{tpu_custom_call.1} parent=1 // pred_region
      _
    $region25: #{tpu_custom_call.1} parent=1 // pred_fallthru
      _
    // Predicated region
    $region26: #{tpu_custom_call.1} parent=1 // pred_check
      _
    $region27: #{tpu_custom_call.1} parent=1 // pred_check_branch
      %29 = sbr.rel (0) target = $region29
    $region28: #{tpu_custom_call.1} parent=1 // pred_region
      _
    $region29: #{tpu_custom_call.1} parent=1 // pred_fallthru
      _
    // Predicated region
    $region30: #{tpu_custom_call.1} parent=1 // pred_check
      _
    $region31: #{tpu_custom_call.1} parent=1 // pred_check_branch
      %31 = sbr.rel (0) target = $region33
    $region32: #{tpu_custom_call.1} parent=1 // pred_region
      _
    $region33: #{tpu_custom_call.1} parent=1 // pred_fallthru
      _
    // Predicated region
    $region34: #{tpu_custom_call.1} parent=1 // pred_check
      _
    $region35: #{tpu_custom_call.1} parent=1 // pred_check_branch
      %33 = sbr.rel (0) target = $region37
    $region36: #{tpu_custom_call.1} parent=1 // pred_region
      _
    $region37: #{tpu_custom_call.1} parent=1 // pred_fallthru
      _
    // Predicated region
    $region38: #{tpu_custom_call.1} parent=1 // pred_check
      _
    $region39: #{tpu_custom_call.1} parent=1 // pred_check_branch
      %35 = sbr.rel (0) target = $region41
    $region40: #{tpu_custom_call.1} parent=1 // pred_region
      _
    $region41: #{tpu_custom_call.1} parent=1 // pred_fallthru
      _
    %v36 = vld [vmem:[%s1] sm:$0xff]
    %v37 = vld [vmem:[%s1 + $0x8] sm:$0xff]
    %v38 = vld [vmem:[%s1 + $0x10] sm:$0xff]
    %v39 = vld [vmem:[%s1 + $0x18] sm:$0xff]
    %v40 = vld [vmem:[%s2] sm:$0x1]
    %v41 = vld [vmem:[%s3] sm:$0x1]
    %vm42 = vcmask 261120
    %v43 = vsel %vm42, %v36, 0.0
    %44 = vadd.xlane.f32.xlu0 %v43
    %v45 = vpop.xlane.xlu0 %44
    %v46 = vsel %vm42, %v37, 0.0
    %47 = vadd.xlane.f32.xlu0 %v46
    %v48 = vpop.xlane.xlu0 %47
    %v49 = vsel %vm42, %v38, 0.0
    %50 = vadd.xlane.f32.xlu0 %v49
    %v51 = vpop.xlane.xlu0 %50
    %v52 = vsel %vm42, %v39, 0.0
    %53 = vadd.xlane.f32.xlu0 %v52
    %v54 = vpop.xlane.xlu0 %53
    %v55 = vrcp.pop 32.0
    %v56 = vmul.f32 %v45, %v55
    %v57 = vmul.f32 %v48, %v55
    %v58 = vmul.f32 %v51, %v55
    %v59 = vmul.f32 %v54, %v55
    %v60 = vsub.f32 %v36, %v56
    %v61 = vsub.f32 %v37, %v57
    %v62 = vsub.f32 %v38, %v58
    %v63 = vsub.f32 %v39, %v59
    %v64 = vmul.f32 %v60, %v60
    %v65 = vmul.f32 %v61, %v61
    %v66 = vmul.f32 %v62, %v62
    %v67 = vmul.f32 %v63, %v63
    %v68 = vsel %vm42, %v64, 0.0
    %69 = vadd.xlane.f32.xlu0 %v68
    %v70 = vpop.xlane.xlu0 %69
    %v71 = vsel %vm42, %v65, 0.0
    %72 = vadd.xlane.f32.xlu0 %v71
    %v73 = vpop.xlane.xlu0 %72
    %v74 = vsel %vm42, %v66, 0.0
    %75 = vadd.xlane.f32.xlu0 %v74
    %v76 = vpop.xlane.xlu0 %75
    %v77 = vsel %vm42, %v67, 0.0
    %78 = vadd.xlane.f32.xlu0 %v77
    %v79 = vpop.xlane.xlu0 %78
    %v80 = vmul.f32 %v70, %v55
    %v81 = vmul.f32 %v73, %v55
    %v82 = vmul.f32 %v76, %v55
    %v83 = vmul.f32 %v79, %v55
    %v84 = vadd.f32 %v80, 1e-05
    %v85 = vadd.f32 %v81, 1e-05
    %v86 = vadd.f32 %v82, 1e-05
    %v87 = vadd.f32 %v83, 1e-05
    %v88 = vrsqrt.pop %v84
    %v89 = vrsqrt.pop %v85
    %v90 = vrsqrt.pop %v86
    %v91 = vrsqrt.pop %v87
    %v92 = vmul.f32 %v60, %v88
    %v93 = vmul.f32 %v61, %v89
    %v94 = vmul.f32 %v62, %v90
    %v95 = vmul.f32 %v63, %v91
    %v97 = vlaneseq
    %v98 = vshrl.u32 %v97, 7
    %v99 = vsub.s32 0, %v98
    %v100 = vrot.slane %v40, %v99
    %v102 = vmul.f32 %v92, %v100
    %v103 = vmul.f32 %v93, %v100
    %v104 = vmul.f32 %v94, %v100
    %v105 = vmul.f32 %v95, %v100
    %v107 = vlaneseq
    %v108 = vshrl.u32 %v107, 7
    %v109 = vsub.s32 0, %v108
    %v110 = vrot.slane %v41, %v109
    %v112 = vadd.f32 %v102, %v110
    %v113 = vadd.f32 %v103, %v110
    %v114 = vadd.f32 %v104, %v110
    %v115 = vadd.f32 %v105, %v110
    %v116 = vld [vmem:[%s0] sm:$0xff]
    %v117 = vld [vmem:[%s0 + $0x8] sm:$0xff]
    %v118 = vld [vmem:[%s4] sm:$0x1]
    %v119 = vld [vmem:[%s5] sm:$0x1]
    %v120 = vsel %vm42, %v116, 0.0
    %121 = vadd.xlane.f32.xlu0 %v120
    %v122 = vpop.xlane.xlu0 %121
    %v123 = vsel %vm42, %v117, 0.0
    %124 = vadd.xlane.f32.xlu0 %v123
    %v125 = vpop.xlane.xlu0 %124
    %v126 = vmul.f32 %v122, %v55
    %v127 = vmul.f32 %v125, %v55
    %v128 = vsub.f32 %v116, %v126
    %v129 = vsub.f32 %v117, %v127
    %v130 = vmul.f32 %v128, %v128
    %v131 = vmul.f32 %v129, %v129
    %v132 = vsel %vm42, %v130, 0.0
    %133 = vadd.xlane.f32.xlu0 %v132
    %v134 = vpop.xlane.xlu0 %133
    %v135 = vsel %vm42, %v131, 0.0
    %136 = vadd.xlane.f32.xlu0 %v135
    %v137 = vpop.xlane.xlu0 %136
    %v138 = vmul.f32 %v134, %v55
    %v139 = vmul.f32 %v137, %v55
    %v140 = vadd.f32 %v138, 1e-05
    %v141 = vadd.f32 %v139, 1e-05
    %v142 = vrsqrt.pop %v140
    %v143 = vrsqrt.pop %v141
    %v144 = vmul.f32 %v128, %v142
    %v145 = vmul.f32 %v129, %v143
    %v147 = vlaneseq
    %v148 = vshrl.u32 %v147, 7
    %v149 = vsub.s32 0, %v148
    %v150 = vrot.slane %v118, %v149
    %v152 = vmul.f32 %v144, %v150
    %v153 = vmul.f32 %v145, %v150
    %v155 = vlaneseq
    %v156 = vshrl.u32 %v155, 7
    %v157 = vsub.s32 0, %v156
    %v158 = vrot.slane %v119, %v157
    %v160 = vadd.f32 %v152, %v158
    %v161 = vadd.f32 %v153, %v158
    %v162 = vld [vmem:[%s6] sm:$0xff]
    %v163 = vld [vmem:[%s6 + $0x8] sm:$0xff]
    %v164 = vld [vmem:[%s6 + $0x10] sm:$0xff]
    %v165 = vld [vmem:[%s6 + $0x18] sm:$0xff]
    %v166 = vld [vmem:[%s7] sm:$0xff]
    %v167 = vld [vmem:[%s7 + $0x8] sm:$0xff]
    %v168 = vld [vmem:[%s7 + $0x10] sm:$0xff]
    %v169 = vld [vmem:[%s7 + $0x18] sm:$0xff]
    %v170 = vld [vmem:[%s8] sm:$0xff]
    %v171 = vld [vmem:[%s8 + $0x8] sm:$0xff]
    %v172 = vld [vmem:[%s8 + $0x10] sm:$0xff]
    %v173 = vld [vmem:[%s8 + $0x18] sm:$0xff]
    %v174 = vld [vmem:[%s9] sm:$0xff]
    %v175 = vld [vmem:[%s9 + $0x8] sm:$0xff]
    %v177 = vsel %vm42, %v160, 0
    %v180 = vsel %vm42, %v161, 0
    %182 = vmatprep.subr.mxu0 0.0
    %183 = vmatpush1.msra.mxu0 0.0
    %184 = vmatprep.subr.mxu0 0.0
    %185 = vmatpush1.msra.mxu0 0.0
    %186 = vmatprep.subr.mxu0 0.0
    %187 = vmatpush1.msra.mxu0 0.0
    %188 = vmatprep.subr.mxu0 0.0
    %189 = vmatpush1.msra.mxu0 0.0
    %190 = vmatprep.subr.mxu0 0.0
    %191 = vmatpush1.msra.mxu0 0.0
    %192 = vmatprep.subr.mxu0 0.0
    %193 = vmatpush1.msra.mxu0 0.0
    %194 = vmatprep.subr.mxu0 0.0
    %195 = vmatpush1.msra.mxu0 0.0
    %196 = vmatprep.subr.mxu0 0.0
    %197 = vmatpush1.msra.mxu0 0.0
    %198 = vmatprep.subr.mxu0 0.0
    %199 = vmatpush1.msra.mxu0 0.0
    %200 = vmatprep.subr.mxu0 0.0
    %201 = vmatpush1.msra.mxu0 0.0
    %202 = vmatprep.subr.mxu0 0.0
    %203 = vmatpush1.msra.mxu0 0.0
    %204 = vmatprep.subr.mxu0 0.0
    %205 = vmatpush1.msra.mxu0 0.0
    %206 = vmatprep.subr.mxu0 0.0
    %207 = vmatpush1.msra.mxu0 %v165
    %208 = vmatprep.subr.mxu0 0.0
    %209 = vmatpush1.msra.mxu0 %v164
    %210 = vmatprep.subr.mxu0 0.0
    %211 = vmatpush1.msra.mxu0 %v163
    %212 = vmatprep.subr.mxu0 0.0
    %213 = vmatpush1.msra.mxu0 %v162
    %214 = vmatprep.subr.mxu0 0.0
    %215 = vmatpush2.msra.mxu0 0.0
    %216 = vmatprep.subr.mxu0 0.0
    %217 = vmatpush2.msra.mxu0 0.0
    %218 = vmatprep.subr.mxu0 0.0
    %219 = vmatpush2.msra.mxu0 0.0
    %220 = vmatprep.subr.mxu0 0.0
    %221 = vmatpush2.msra.mxu0 0.0
    %222 = vmatprep.subr.mxu0 0.0
    %223 = vmatpush2.msra.mxu0 0.0
    %224 = vmatprep.subr.mxu0 0.0
    %225 = vmatpush2.msra.mxu0 0.0
    %226 = vmatprep.subr.mxu0 0.0
    %227 = vmatpush2.msra.mxu0 0.0
    %228 = vmatprep.subr.mxu0 0.0
    %229 = vmatpush2.msra.mxu0 0.0
    %230 = vmatprep.subr.mxu0 0.0
    %231 = vmatpush2.msra.mxu0 0.0
    %232 = vmatprep.subr.mxu0 0.0
    %233 = vmatpush2.msra.mxu0 0.0
    %234 = vmatprep.subr.mxu0 0.0
    %235 = vmatpush2.msra.mxu0 0.0
    %236 = vmatprep.subr.mxu0 0.0
    %237 = vmatpush2.msra.mxu0 0.0
    %238 = vmatprep.subr.mxu0 0.0
    %239 = vmatpush2.msra.mxu0 0.0
    %240 = vmatprep.subr.mxu0 0.0
    %241 = vmatpush2.msra.mxu0 0.0
    %242 = vmatprep.subr.mxu0 0.0
    %243 = vmatpush2.msra.mxu0 0.0
    %244 = vmatprep.subr.mxu0 0.0
    %245 = vmatpush2.msra.mxu0 0.0
    %246 = vmatprep.mubr.f32.mxu0 0.0
    %247 = vmatmul.mubr.f32.gmra.mxu0 %v177
    %v248 = vpop.f32.mrf.mxu0
    %v249 = vadd.f32 0.0, %v248
    %v250 = vpop.f32.mrf.mxu0
    %251 = vmatprep.mubr.f32.mxu0 0.0
    %252 = vmatmul.mubr.f32.gmra.mxu0 %v180
    %v253 = vpop.f32.mrf.mxu0
    %v254 = vadd.f32 0.0, %v253
    %v255 = vpop.f32.mrf.mxu0
    %256 = vdwg.mxu0
    %257 = vmatprep.subr.mxu0 0.0
    %258 = vmatpush1.msra.mxu0 0.0
    %259 = vmatprep.subr.mxu0 0.0
    %260 = vmatpush1.msra.mxu0 0.0
    %261 = vmatprep.subr.mxu0 0.0
    %262 = vmatpush1.msra.mxu0 0.0
    %263 = vmatprep.subr.mxu0 0.0
    %264 = vmatpush1.msra.mxu0 0.0
    %265 = vmatprep.subr.mxu0 0.0
    %266 = vmatpush1.msra.mxu0 0.0
    %267 = vmatprep.subr.mxu0 0.0
    %268 = vmatpush1.msra.mxu0 0.0
    %269 = vmatprep.subr.mxu0 0.0
    %270 = vmatpush1.msra.mxu0 0.0
    %271 = vmatprep.subr.mxu0 0.0
    %272 = vmatpush1.msra.mxu0 0.0
    %273 = vmatprep.subr.mxu0 0.0
    %274 = vmatpush1.msra.mxu0 0.0
    %275 = vmatprep.subr.mxu0 0.0
    %276 = vmatpush1.msra.mxu0 0.0
    %277 = vmatprep.subr.mxu0 0.0
    %278 = vmatpush1.msra.mxu0 0.0
    %279 = vmatprep.subr.mxu0 0.0
    %280 = vmatpush1.msra.mxu0 0.0
    %281 = vmatprep.subr.mxu0 0.0
    %282 = vmatpush1.msra.mxu0 %v169
    %283 = vmatprep.subr.mxu0 0.0
    %284 = vmatpush1.msra.mxu0 %v168
    %285 = vmatprep.subr.mxu0 0.0
    %286 = vmatpush1.msra.mxu0 %v167
    %287 = vmatprep.subr.mxu0 0.0
    %288 = vmatpush1.msra.mxu0 %v166
    %289 = vmatprep.subr.mxu0 0.0
    %290 = vmatpush2.msra.mxu0 0.0
    %291 = vmatprep.subr.mxu0 0.0
    %292 = vmatpush2.msra.mxu0 0.0
    %293 = vmatprep.subr.mxu0 0.0
    %294 = vmatpush2.msra.mxu0 0.0
    %295 = vmatprep.subr.mxu0 0.0
    %296 = vmatpush2.msra.mxu0 0.0
    %297 = vmatprep.subr.mxu0 0.0
    %298 = vmatpush2.msra.mxu0 0.0
    %299 = vmatprep.subr.mxu0 0.0
    %300 = vmatpush2.msra.mxu0 0.0
    %301 = vmatprep.subr.mxu0 0.0
    %302 = vmatpush2.msra.mxu0 0.0
    %303 = vmatprep.subr.mxu0 0.0
    %304 = vmatpush2.msra.mxu0 0.0
    %305 = vmatprep.subr.mxu0 0.0
    %306 = vmatpush2.msra.mxu0 0.0
    %307 = vmatprep.subr.mxu0 0.0
    %308 = vmatpush2.msra.mxu0 0.0
    %309 = vmatprep.subr.mxu0 0.0
    %310 = vmatpush2.msra.mxu0 0.0
    %311 = vmatprep.subr.mxu0 0.0
    %312 = vmatpush2.msra.mxu0 0.0
    %313 = vmatprep.subr.mxu0 0.0
    %314 = vmatpush2.msra.mxu0 0.0
    %315 = vmatprep.subr.mxu0 0.0
    %316 = vmatpush2.msra.mxu0 0.0
    %317 = vmatprep.subr.mxu0 0.0
    %318 = vmatpush2.msra.mxu0 0.0
    %319 = vmatprep.subr.mxu0 0.0
    %320 = vmatpush2.msra.mxu0 0.0
    %321 = vmatprep.mubr.f32.mxu0 0.0
    %322 = vmatmul.mubr.f32.gmra.mxu0 %v177
    %v323 = vpop.f32.mrf.mxu0
    %v324 = vadd.f32 0.0, %v323
    %v325 = vpop.f32.mrf.mxu0
    %326 = vmatprep.mubr.f32.mxu0 0.0
    %327 = vmatmul.mubr.f32.gmra.mxu0 %v180
    %v328 = vpop.f32.mrf.mxu0
    %v329 = vadd.f32 0.0, %v328
    %v330 = vpop.f32.mrf.mxu0
    %331 = vdwg.mxu0
    %332 = vmatprep.subr.mxu0 0.0
    %333 = vmatpush1.msra.mxu0 0.0
    %334 = vmatprep.subr.mxu0 0.0
    %335 = vmatpush1.msra.mxu0 0.0
    %336 = vmatprep.subr.mxu0 0.0
    %337 = vmatpush1.msra.mxu0 0.0
    %338 = vmatprep.subr.mxu0 0.0
    %339 = vmatpush1.msra.mxu0 0.0
    %340 = vmatprep.subr.mxu0 0.0
    %341 = vmatpush1.msra.mxu0 0.0
    %342 = vmatprep.subr.mxu0 0.0
    %343 = vmatpush1.msra.mxu0 0.0
    %344 = vmatprep.subr.mxu0 0.0
    %345 = vmatpush1.msra.mxu0 0.0
    %346 = vmatprep.subr.mxu0 0.0
    %347 = vmatpush1.msra.mxu0 0.0
    %348 = vmatprep.subr.mxu0 0.0
    %349 = vmatpush1.msra.mxu0 0.0
    %350 = vmatprep.subr.mxu0 0.0
    %351 = vmatpush1.msra.mxu0 0.0
    %352 = vmatprep.subr.mxu0 0.0
    %353 = vmatpush1.msra.mxu0 0.0
    %354 = vmatprep.subr.mxu0 0.0
    %355 = vmatpush1.msra.mxu0 0.0
    %356 = vmatprep.subr.mxu0 0.0
    %357 = vmatpush1.msra.mxu0 %v173
    %358 = vmatprep.subr.mxu0 0.0
    %359 = vmatpush1.msra.mxu0 %v172
    %360 = vmatprep.subr.mxu0 0.0
    %361 = vmatpush1.msra.mxu0 %v171
    %362 = vmatprep.subr.mxu0 0.0
    %363 = vmatpush1.msra.mxu0 %v170
    %364 = vmatprep.subr.mxu0 0.0
    %365 = vmatpush2.msra.mxu0 0.0
    %366 = vmatprep.subr.mxu0 0.0
    %367 = vmatpush2.msra.mxu0 0.0
    %368 = vmatprep.subr.mxu0 0.0
    %369 = vmatpush2.msra.mxu0 0.0
    %370 = vmatprep.subr.mxu0 0.0
    %371 = vmatpush2.msra.mxu0 0.0
    %372 = vmatprep.subr.mxu0 0.0
    %373 = vmatpush2.msra.mxu0 0.0
    %374 = vmatprep.subr.mxu0 0.0
    %375 = vmatpush2.msra.mxu0 0.0
    %376 = vmatprep.subr.mxu0 0.0
    %377 = vmatpush2.msra.mxu0 0.0
    %378 = vmatprep.subr.mxu0 0.0
    %379 = vmatpush2.msra.mxu0 0.0
    %380 = vmatprep.subr.mxu0 0.0
    %381 = vmatpush2.msra.mxu0 0.0
    %382 = vmatprep.subr.mxu0 0.0
    %383 = vmatpush2.msra.mxu0 0.0
    %384 = vmatprep.subr.mxu0 0.0
    %385 = vmatpush2.msra.mxu0 0.0
    %386 = vmatprep.subr.mxu0 0.0
    %387 = vmatpush2.msra.mxu0 0.0
    %388 = vmatprep.subr.mxu0 0.0
    %389 = vmatpush2.msra.mxu0 0.0
    %390 = vmatprep.subr.mxu0 0.0
    %391 = vmatpush2.msra.mxu0 0.0
    %392 = vmatprep.subr.mxu0 0.0
    %393 = vmatpush2.msra.mxu0 0.0
    %394 = vmatprep.subr.mxu0 0.0
    %395 = vmatpush2.msra.mxu0 0.0
    %396 = vmatprep.mubr.f32.mxu0 0.0
    %397 = vmatmul.mubr.f32.gmra.mxu0 %v177
    %v398 = vpop.f32.mrf.mxu0
    %v399 = vadd.f32 0.0, %v398
    %v400 = vpop.f32.mrf.mxu0
    %401 = vmatprep.mubr.f32.mxu0 0.0
    %402 = vmatmul.mubr.f32.gmra.mxu0 %v180
    %v403 = vpop.f32.mrf.mxu0
    %v404 = vadd.f32 0.0, %v403
    %v405 = vpop.f32.mrf.mxu0
    %406 = vdwg.mxu0
    %v408 = vsel %vm42, %v112, 0
    %v411 = vsel %vm42, %v113, 0
    %v414 = vsel %vm42, %v114, 0
    %v417 = vsel %vm42, %v115, 0
    %419 = vmatprep.subr.mxu0 0.0
    %420 = vmatpush1.msra.mxu0 0.0
    %421 = vmatprep.subr.mxu0 0.0
    %422 = vmatpush1.msra.mxu0 0.0
    %423 = vmatprep.subr.mxu0 0.0
    %424 = vmatpush1.msra.mxu0 0.0
    %425 = vmatprep.subr.mxu0 0.0
    %426 = vmatpush1.msra.mxu0 0.0
    %427 = vmatprep.subr.mxu0 0.0
    %428 = vmatpush1.msra.mxu0 0.0
    %429 = vmatprep.subr.mxu0 0.0
    %430 = vmatpush1.msra.mxu0 0.0
    %431 = vmatprep.subr.mxu0 0.0
    %432 = vmatpush1.msra.mxu0 0.0
    %433 = vmatprep.subr.mxu0 0.0
    %434 = vmatpush1.msra.mxu0 0.0
    %435 = vmatprep.subr.mxu0 0.0
    %436 = vmatpush1.msra.mxu0 0.0
    %437 = vmatprep.subr.mxu0 0.0
    %438 = vmatpush1.msra.mxu0 0.0
    %439 = vmatprep.subr.mxu0 0.0
    %440 = vmatpush1.msra.mxu0 0.0
    %441 = vmatprep.subr.mxu0 0.0
    %442 = vmatpush1.msra.mxu0 0.0
    %443 = vmatprep.subr.mxu0 0.0
    %444 = vmatpush1.msra.mxu0 %v169
    %445 = vmatprep.subr.mxu0 0.0
    %446 = vmatpush1.msra.mxu0 %v168
    %447 = vmatprep.subr.mxu0 0.0
    %448 = vmatpush1.msra.mxu0 %v167
    %449 = vmatprep.subr.mxu0 0.0
    %450 = vmatpush1.msra.mxu0 %v166
    %451 = vmatprep.subr.mxu0 0.0
    %452 = vmatpush2.msra.mxu0 0.0
    %453 = vmatprep.subr.mxu0 0.0
    %454 = vmatpush2.msra.mxu0 0.0
    %455 = vmatprep.subr.mxu0 0.0
    %456 = vmatpush2.msra.mxu0 0.0
    %457 = vmatprep.subr.mxu0 0.0
    %458 = vmatpush2.msra.mxu0 0.0
    %459 = vmatprep.subr.mxu0 0.0
    %460 = vmatpush2.msra.mxu0 0.0
    %461 = vmatprep.subr.mxu0 0.0
    %462 = vmatpush2.msra.mxu0 0.0
    %463 = vmatprep.subr.mxu0 0.0
    %464 = vmatpush2.msra.mxu0 0.0
    %465 = vmatprep.subr.mxu0 0.0
    %466 = vmatpush2.msra.mxu0 0.0
    %467 = vmatprep.subr.mxu0 0.0
    %468 = vmatpush2.msra.mxu0 0.0
    %469 = vmatprep.subr.mxu0 0.0
    %470 = vmatpush2.msra.mxu0 0.0
    %471 = vmatprep.subr.mxu0 0.0
    %472 = vmatpush2.msra.mxu0 0.0
    %473 = vmatprep.subr.mxu0 0.0
    %474 = vmatpush2.msra.mxu0 0.0
    %475 = vmatprep.subr.mxu0 0.0
    %476 = vmatpush2.msra.mxu0 0.0
    %477 = vmatprep.subr.mxu0 0.0
    %478 = vmatpush2.msra.mxu0 0.0
    %479 = vmatprep.subr.mxu0 0.0
    %480 = vmatpush2.msra.mxu0 0.0
    %481 = vmatprep.subr.mxu0 0.0
    %482 = vmatpush2.msra.mxu0 0.0
    %483 = vmatprep.mubr.f32.mxu0 0.0
    %484 = vmatmul.mubr.f32.gmra.mxu0 %v408
    %v485 = vpop.f32.mrf.mxu0
    %v486 = vadd.f32 0.0, %v485
    %v487 = vpop.f32.mrf.mxu0
    %488 = vmatprep.mubr.f32.mxu0 0.0
    %489 = vmatmul.mubr.f32.gmra.mxu0 %v411
    %v490 = vpop.f32.mrf.mxu0
    %v491 = vadd.f32 0.0, %v490
    %v492 = vpop.f32.mrf.mxu0
    %493 = vmatprep.mubr.f32.mxu0 0.0
    %494 = vmatmul.mubr.f32.gmra.mxu0 %v414
    %v495 = vpop.f32.mrf.mxu0
    %v496 = vadd.f32 0.0, %v495
    %v497 = vpop.f32.mrf.mxu0
    %498 = vmatprep.mubr.f32.mxu0 0.0
    %499 = vmatmul.mubr.f32.gmra.mxu0 %v417
    %v500 = vpop.f32.mrf.mxu0
    %v501 = vadd.f32 0.0, %v500
    %v502 = vpop.f32.mrf.mxu0
    %503 = vdwg.mxu0
    %504 = vmatprep.subr.mxu0 0.0
    %505 = vmatpush1.msra.mxu0 0.0
    %506 = vmatprep.subr.mxu0 0.0
    %507 = vmatpush1.msra.mxu0 0.0
    %508 = vmatprep.subr.mxu0 0.0
    %509 = vmatpush1.msra.mxu0 0.0
    %510 = vmatprep.subr.mxu0 0.0
    %511 = vmatpush1.msra.mxu0 0.0
    %512 = vmatprep.subr.mxu0 0.0
    %513 = vmatpush1.msra.mxu0 0.0
    %514 = vmatprep.subr.mxu0 0.0
    %515 = vmatpush1.msra.mxu0 0.0
    %516 = vmatprep.subr.mxu0 0.0
    %517 = vmatpush1.msra.mxu0 0.0
    %518 = vmatprep.subr.mxu0 0.0
    %519 = vmatpush1.msra.mxu0 0.0
    %520 = vmatprep.subr.mxu0 0.0
    %521 = vmatpush1.msra.mxu0 0.0
    %522 = vmatprep.subr.mxu0 0.0
    %523 = vmatpush1.msra.mxu0 0.0
    %524 = vmatprep.subr.mxu0 0.0
    %525 = vmatpush1.msra.mxu0 0.0
    %526 = vmatprep.subr.mxu0 0.0
    %527 = vmatpush1.msra.mxu0 0.0
    %528 = vmatprep.subr.mxu0 0.0
    %529 = vmatpush1.msra.mxu0 %v173
    %530 = vmatprep.subr.mxu0 0.0
    %531 = vmatpush1.msra.mxu0 %v172
    %532 = vmatprep.subr.mxu0 0.0
    %533 = vmatpush1.msra.mxu0 %v171
    %534 = vmatprep.subr.mxu0 0.0
    %535 = vmatpush1.msra.mxu0 %v170
    %536 = vmatprep.subr.mxu0 0.0
    %537 = vmatpush2.msra.mxu0 0.0
    %538 = vmatprep.subr.mxu0 0.0
    %539 = vmatpush2.msra.mxu0 0.0
    %540 = vmatprep.subr.mxu0 0.0
    %541 = vmatpush2.msra.mxu0 0.0
    %542 = vmatprep.subr.mxu0 0.0
    %543 = vmatpush2.msra.mxu0 0.0
    %544 = vmatprep.subr.mxu0 0.0
    %545 = vmatpush2.msra.mxu0 0.0
    %546 = vmatprep.subr.mxu0 0.0
    %547 = vmatpush2.msra.mxu0 0.0
    %548 = vmatprep.subr.mxu0 0.0
    %549 = vmatpush2.msra.mxu0 0.0
    %550 = vmatprep.subr.mxu0 0.0
    %551 = vmatpush2.msra.mxu0 0.0
    %552 = vmatprep.subr.mxu0 0.0
    %553 = vmatpush2.msra.mxu0 0.0
    %554 = vmatprep.subr.mxu0 0.0
    %555 = vmatpush2.msra.mxu0 0.0
    %556 = vmatprep.subr.mxu0 0.0
    %557 = vmatpush2.msra.mxu0 0.0
    %558 = vmatprep.subr.mxu0 0.0
    %559 = vmatpush2.msra.mxu0 0.0
    %560 = vmatprep.subr.mxu0 0.0
    %561 = vmatpush2.msra.mxu0 0.0
    %562 = vmatprep.subr.mxu0 0.0
    %563 = vmatpush2.msra.mxu0 0.0
    %564 = vmatprep.subr.mxu0 0.0
    %565 = vmatpush2.msra.mxu0 0.0
    %566 = vmatprep.subr.mxu0 0.0
    %567 = vmatpush2.msra.mxu0 0.0
    %568 = vmatprep.mubr.f32.mxu0 0.0
    %569 = vmatmul.mubr.f32.gmra.mxu0 %v408
    %v570 = vpop.f32.mrf.mxu0
    %v571 = vadd.f32 0.0, %v570
    %v572 = vpop.f32.mrf.mxu0
    %573 = vmatprep.mubr.f32.mxu0 0.0
    %574 = vmatmul.mubr.f32.gmra.mxu0 %v411
    %v575 = vpop.f32.mrf.mxu0
    %v576 = vadd.f32 0.0, %v575
    %v577 = vpop.f32.mrf.mxu0
    %578 = vmatprep.mubr.f32.mxu0 0.0
    %579 = vmatmul.mubr.f32.gmra.mxu0 %v414
    %v580 = vpop.f32.mrf.mxu0
    %v581 = vadd.f32 0.0, %v580
    %v582 = vpop.f32.mrf.mxu0
    %583 = vmatprep.mubr.f32.mxu0 0.0
    %584 = vmatmul.mubr.f32.gmra.mxu0 %v417
    %v585 = vpop.f32.mrf.mxu0
    %v586 = vadd.f32 0.0, %v585
    %v587 = vpop.f32.mrf.mxu0
    %588 = vdwg.mxu0
    %vm589 = vcmask 130048
    %v591 = vsel %vm589, %v249, 0
    %v594 = vsel %vm589, %v486, 0
    %v597 = vsel %vm589, %v491, 0
    %599 = vmatprep.subr.mxu0 0.0
    %600 = vmatpush1.xpose.msra.mxu0 0.0
    %601 = vmatprep.subr.mxu0 0.0
    %602 = vmatpush1.xpose.msra.mxu0 0.0
    %603 = vmatprep.subr.mxu0 0.0
    %604 = vmatpush1.xpose.msra.mxu0 0.0
    %605 = vmatprep.subr.mxu0 0.0
    %606 = vmatpush1.xpose.msra.mxu0 0.0
    %607 = vmatprep.subr.mxu0 0.0
    %608 = vmatpush1.xpose.msra.mxu0 0.0
    %609 = vmatprep.subr.mxu0 0.0
    %610 = vmatpush1.xpose.msra.mxu0 0.0
    %611 = vmatprep.subr.mxu0 0.0
    %612 = vmatpush1.xpose.msra.mxu0 0.0
    %613 = vmatprep.subr.mxu0 0.0
    %614 = vmatpush1.xpose.msra.mxu0 0.0
    %615 = vmatprep.subr.mxu0 0.0
    %616 = vmatpush1.xpose.msra.mxu0 0.0
    %617 = vmatprep.subr.mxu0 0.0
    %618 = vmatpush1.xpose.msra.mxu0 0.0
    %619 = vmatprep.subr.mxu0 0.0
    %620 = vmatpush1.xpose.msra.mxu0 0.0
    %621 = vmatprep.subr.mxu0 0.0
    %622 = vmatpush1.xpose.msra.mxu0 0.0
    %623 = vmatprep.subr.mxu0 0.0
    %624 = vmatpush1.xpose.msra.mxu0 0.0
    %625 = vmatprep.subr.mxu0 0.0
    %626 = vmatpush1.xpose.msra.mxu0 0.0
    %627 = vmatprep.subr.mxu0 0.0
    %628 = vmatpush1.xpose.msra.mxu0 %v597
    %629 = vmatprep.subr.mxu0 0.0
    %630 = vmatpush1.xpose.msra.mxu0 %v594
    %631 = vmatprep.subr.mxu0 0.0
    %632 = vmatpush2.xpose.msra.mxu0 0.0
    %633 = vmatprep.subr.mxu0 0.0
    %634 = vmatpush2.xpose.msra.mxu0 0.0
    %635 = vmatprep.subr.mxu0 0.0
    %636 = vmatpush2.xpose.msra.mxu0 0.0
    %637 = vmatprep.subr.mxu0 0.0
    %638 = vmatpush2.xpose.msra.mxu0 0.0
    %639 = vmatprep.subr.mxu0 0.0
    %640 = vmatpush2.xpose.msra.mxu0 0.0
    %641 = vmatprep.subr.mxu0 0.0
    %642 = vmatpush2.xpose.msra.mxu0 0.0
    %643 = vmatprep.subr.mxu0 0.0
    %644 = vmatpush2.xpose.msra.mxu0 0.0
    %645 = vmatprep.subr.mxu0 0.0
    %646 = vmatpush2.xpose.msra.mxu0 0.0
    %647 = vmatprep.subr.mxu0 0.0
    %648 = vmatpush2.xpose.msra.mxu0 0.0
    %649 = vmatprep.subr.mxu0 0.0
    %650 = vmatpush2.xpose.msra.mxu0 0.0
    %651 = vmatprep.subr.mxu0 0.0
    %652 = vmatpush2.xpose.msra.mxu0 0.0
    %653 = vmatprep.subr.mxu0 0.0
    %654 = vmatpush2.xpose.msra.mxu0 0.0
    %655 = vmatprep.subr.mxu0 0.0
    %656 = vmatpush2.xpose.msra.mxu0 0.0
    %657 = vmatprep.subr.mxu0 0.0
    %658 = vmatpush2.xpose.msra.mxu0 0.0
    %659 = vmatprep.subr.mxu0 0.0
    %660 = vmatpush2.xpose.msra.mxu0 0.0
    %661 = vmatprep.subr.mxu0 0.0
    %662 = vmatpush2.xpose.msra.mxu0 0.0
    %663 = vmatprep.mubr.f32.mxu0 0.0
    %664 = vmatmul.mubr.f32.gmra.mxu0 %v591
    %v665 = vpop.f32.mrf.mxu0
    %v666 = vadd.f32 0.0, %v665
    %v667 = vpop.f32.mrf.mxu0
    %668 = vdwg.mxu0
    %v670 = vsel %vm589, %v254, 0
    %v673 = vsel %vm589, %v496, 0
    %v676 = vsel %vm589, %v501, 0
    %678 = vmatprep.subr.mxu0 0.0
    %679 = vmatpush1.xpose.msra.mxu0 0.0
    %680 = vmatprep.subr.mxu0 0.0
    %681 = vmatpush1.xpose.msra.mxu0 0.0
    %682 = vmatprep.subr.mxu0 0.0
    %683 = vmatpush1.xpose.msra.mxu0 0.0
    %684 = vmatprep.subr.mxu0 0.0
    %685 = vmatpush1.xpose.msra.mxu0 0.0
    %686 = vmatprep.subr.mxu0 0.0
    %687 = vmatpush1.xpose.msra.mxu0 0.0
    %688 = vmatprep.subr.mxu0 0.0
    %689 = vmatpush1.xpose.msra.mxu0 0.0
    %690 = vmatprep.subr.mxu0 0.0
    %691 = vmatpush1.xpose.msra.mxu0 0.0
    %692 = vmatprep.subr.mxu0 0.0
    %693 = vmatpush1.xpose.msra.mxu0 0.0
    %694 = vmatprep.subr.mxu0 0.0
    %695 = vmatpush1.xpose.msra.mxu0 0.0
    %696 = vmatprep.subr.mxu0 0.0
    %697 = vmatpush1.xpose.msra.mxu0 0.0
    %698 = vmatprep.subr.mxu0 0.0
    %699 = vmatpush1.xpose.msra.mxu0 0.0
    %700 = vmatprep.subr.mxu0 0.0
    %701 = vmatpush1.xpose.msra.mxu0 0.0
    %702 = vmatprep.subr.mxu0 0.0
    %703 = vmatpush1.xpose.msra.mxu0 0.0
    %704 = vmatprep.subr.mxu0 0.0
    %705 = vmatpush1.xpose.msra.mxu0 0.0
    %706 = vmatprep.subr.mxu0 0.0
    %707 = vmatpush1.xpose.msra.mxu0 %v676
    %708 = vmatprep.subr.mxu0 0.0
    %709 = vmatpush1.xpose.msra.mxu0 %v673
    %710 = vmatprep.subr.mxu0 0.0
    %711 = vmatpush2.xpose.msra.mxu0 0.0
    %712 = vmatprep.subr.mxu0 0.0
    %713 = vmatpush2.xpose.msra.mxu0 0.0
    %714 = vmatprep.subr.mxu0 0.0
    %715 = vmatpush2.xpose.msra.mxu0 0.0
    %716 = vmatprep.subr.mxu0 0.0
    %717 = vmatpush2.xpose.msra.mxu0 0.0
    %718 = vmatprep.subr.mxu0 0.0
    %719 = vmatpush2.xpose.msra.mxu0 0.0
    %720 = vmatprep.subr.mxu0 0.0
    %721 = vmatpush2.xpose.msra.mxu0 0.0
    %722 = vmatprep.subr.mxu0 0.0
    %723 = vmatpush2.xpose.msra.mxu0 0.0
    %724 = vmatprep.subr.mxu0 0.0
    %725 = vmatpush2.xpose.msra.mxu0 0.0
    %726 = vmatprep.subr.mxu0 0.0
    %727 = vmatpush2.xpose.msra.mxu0 0.0
    %728 = vmatprep.subr.mxu0 0.0
    %729 = vmatpush2.xpose.msra.mxu0 0.0
    %730 = vmatprep.subr.mxu0 0.0
    %731 = vmatpush2.xpose.msra.mxu0 0.0
    %732 = vmatprep.subr.mxu0 0.0
    %733 = vmatpush2.xpose.msra.mxu0 0.0
    %734 = vmatprep.subr.mxu0 0.0
    %735 = vmatpush2.xpose.msra.mxu0 0.0
    %736 = vmatprep.subr.mxu0 0.0
    %737 = vmatpush2.xpose.msra.mxu0 0.0
    %738 = vmatprep.subr.mxu0 0.0
    %739 = vmatpush2.xpose.msra.mxu0 0.0
    %740 = vmatprep.subr.mxu0 0.0
    %741 = vmatpush2.xpose.msra.mxu0 0.0
    %742 = vmatprep.mubr.f32.mxu0 0.0
    %743 = vmatmul.mubr.f32.gmra.mxu0 %v670
    %v744 = vpop.f32.mrf.mxu0
    %v745 = vadd.f32 0.0, %v744
    %v746 = vpop.f32.mrf.mxu0
    %747 = vdwg.mxu0
    %v749 = vsel %vm589, %v324, 0
    %751 = vmatprep.subr.mxu0 0.0
    %752 = vmatpush1.xpose.msra.mxu0 0.0
    %753 = vmatprep.subr.mxu0 0.0
    %754 = vmatpush1.xpose.msra.mxu0 0.0
    %755 = vmatprep.subr.mxu0 0.0
    %756 = vmatpush1.xpose.msra.mxu0 0.0
    %757 = vmatprep.subr.mxu0 0.0
    %758 = vmatpush1.xpose.msra.mxu0 0.0
    %759 = vmatprep.subr.mxu0 0.0
    %760 = vmatpush1.xpose.msra.mxu0 0.0
    %761 = vmatprep.subr.mxu0 0.0
    %762 = vmatpush1.xpose.msra.mxu0 0.0
    %763 = vmatprep.subr.mxu0 0.0
    %764 = vmatpush1.xpose.msra.mxu0 0.0
    %765 = vmatprep.subr.mxu0 0.0
    %766 = vmatpush1.xpose.msra.mxu0 0.0
    %767 = vmatprep.subr.mxu0 0.0
    %768 = vmatpush1.xpose.msra.mxu0 0.0
    %769 = vmatprep.subr.mxu0 0.0
    %770 = vmatpush1.xpose.msra.mxu0 0.0
    %771 = vmatprep.subr.mxu0 0.0
    %772 = vmatpush1.xpose.msra.mxu0 0.0
    %773 = vmatprep.subr.mxu0 0.0
    %774 = vmatpush1.xpose.msra.mxu0 0.0
    %775 = vmatprep.subr.mxu0 0.0
    %776 = vmatpush1.xpose.msra.mxu0 0.0
    %777 = vmatprep.subr.mxu0 0.0
    %778 = vmatpush1.xpose.msra.mxu0 0.0
    %779 = vmatprep.subr.mxu0 0.0
    %780 = vmatpush1.xpose.msra.mxu0 0.0
    %781 = vmatprep.subr.mxu0 0.0
    %782 = vmatpush1.xpose.msra.mxu0 %v749
    %783 = vmatprep.subr.mxu0 0.0
    %784 = vmatpush2.xpose.msra.mxu0 0.0
    %785 = vmatprep.subr.mxu0 0.0
    %786 = vmatpush2.xpose.msra.mxu0 0.0
    %787 = vmatprep.subr.mxu0 0.0
    %788 = vmatpush2.xpose.msra.mxu0 0.0
    %789 = vmatprep.subr.mxu0 0.0
    %790 = vmatpush2.xpose.msra.mxu0 0.0
    %791 = vmatprep.subr.mxu0 0.0
    %792 = vmatpush2.xpose.msra.mxu0 0.0
    %793 = vmatprep.subr.mxu0 0.0
    %794 = vmatpush2.xpose.msra.mxu0 0.0
    %795 = vmatprep.subr.mxu0 0.0
    %796 = vmatpush2.xpose.msra.mxu0 0.0
    %797 = vmatprep.subr.mxu0 0.0
    %798 = vmatpush2.xpose.msra.mxu0 0.0
    %799 = vmatprep.subr.mxu0 0.0
    %800 = vmatpush2.xpose.msra.mxu0 0.0
    %801 = vmatprep.subr.mxu0 0.0
    %802 = vmatpush2.xpose.msra.mxu0 0.0
    %803 = vmatprep.subr.mxu0 0.0
    %804 = vmatpush2.xpose.msra.mxu0 0.0
    %805 = vmatprep.subr.mxu0 0.0
    %806 = vmatpush2.xpose.msra.mxu0 0.0
    %807 = vmatprep.subr.mxu0 0.0
    %808 = vmatpush2.xpose.msra.mxu0 0.0
    %809 = vmatprep.subr.mxu0 0.0
    %810 = vmatpush2.xpose.msra.mxu0 0.0
    %811 = vmatprep.subr.mxu0 0.0
    %812 = vmatpush2.xpose.msra.mxu0 0.0
    %813 = vmatprep.subr.mxu0 0.0
    %814 = vmatpush2.xpose.msra.mxu0 0.0
    %815 = vmatprep.mubr.f32.mxu0 0.0
    %816 = vmatmul.mubr.f32.gmra.mxu0 %v591
    %v817 = vpop.f32.mrf.mxu0
    %v818 = vadd.f32 0.0, %v817
    %v819 = vpop.f32.mrf.mxu0
    %820 = vdwg.mxu0
    %v822 = vsel %vm589, %v329, 0
    %824 = vmatprep.subr.mxu0 0.0
    %825 = vmatpush1.xpose.msra.mxu0 0.0
    %826 = vmatprep.subr.mxu0 0.0
    %827 = vmatpush1.xpose.msra.mxu0 0.0
    %828 = vmatprep.subr.mxu0 0.0
    %829 = vmatpush1.xpose.msra.mxu0 0.0
    %830 = vmatprep.subr.mxu0 0.0
    %831 = vmatpush1.xpose.msra.mxu0 0.0
    %832 = vmatprep.subr.mxu0 0.0
    %833 = vmatpush1.xpose.msra.mxu0 0.0
    %834 = vmatprep.subr.mxu0 0.0
    %835 = vmatpush1.xpose.msra.mxu0 0.0
    %836 = vmatprep.subr.mxu0 0.0
    %837 = vmatpush1.xpose.msra.mxu0 0.0
    %838 = vmatprep.subr.mxu0 0.0
    %839 = vmatpush1.xpose.msra.mxu0 0.0
    %840 = vmatprep.subr.mxu0 0.0
    %841 = vmatpush1.xpose.msra.mxu0 0.0
    %842 = vmatprep.subr.mxu0 0.0
    %843 = vmatpush1.xpose.msra.mxu0 0.0
    %844 = vmatprep.subr.mxu0 0.0
    %845 = vmatpush1.xpose.msra.mxu0 0.0
    %846 = vmatprep.subr.mxu0 0.0
    %847 = vmatpush1.xpose.msra.mxu0 0.0
    %848 = vmatprep.subr.mxu0 0.0
    %849 = vmatpush1.xpose.msra.mxu0 0.0
    %850 = vmatprep.subr.mxu0 0.0
    %851 = vmatpush1.xpose.msra.mxu0 0.0
    %852 = vmatprep.subr.mxu0 0.0
    %853 = vmatpush1.xpose.msra.mxu0 0.0
    %854 = vmatprep.subr.mxu0 0.0
    %855 = vmatpush1.xpose.msra.mxu0 %v822
    %856 = vmatprep.subr.mxu0 0.0
    %857 = vmatpush2.xpose.msra.mxu0 0.0
    %858 = vmatprep.subr.mxu0 0.0
    %859 = vmatpush2.xpose.msra.mxu0 0.0
    %860 = vmatprep.subr.mxu0 0.0
    %861 = vmatpush2.xpose.msra.mxu0 0.0
    %862 = vmatprep.subr.mxu0 0.0
    %863 = vmatpush2.xpose.msra.mxu0 0.0
    %864 = vmatprep.subr.mxu0 0.0
    %865 = vmatpush2.xpose.msra.mxu0 0.0
    %866 = vmatprep.subr.mxu0 0.0
    %867 = vmatpush2.xpose.msra.mxu0 0.0
    %868 = vmatprep.subr.mxu0 0.0
    %869 = vmatpush2.xpose.msra.mxu0 0.0
    %870 = vmatprep.subr.mxu0 0.0
    %871 = vmatpush2.xpose.msra.mxu0 0.0
    %872 = vmatprep.subr.mxu0 0.0
    %873 = vmatpush2.xpose.msra.mxu0 0.0
    %874 = vmatprep.subr.mxu0 0.0
    %875 = vmatpush2.xpose.msra.mxu0 0.0
    %876 = vmatprep.subr.mxu0 0.0
    %877 = vmatpush2.xpose.msra.mxu0 0.0
    %878 = vmatprep.subr.mxu0 0.0
    %879 = vmatpush2.xpose.msra.mxu0 0.0
    %880 = vmatprep.subr.mxu0 0.0
    %881 = vmatpush2.xpose.msra.mxu0 0.0
    %882 = vmatprep.subr.mxu0 0.0
    %883 = vmatpush2.xpose.msra.mxu0 0.0
    %884 = vmatprep.subr.mxu0 0.0
    %885 = vmatpush2.xpose.msra.mxu0 0.0
    %886 = vmatprep.subr.mxu0 0.0
    %887 = vmatpush2.xpose.msra.mxu0 0.0
    %888 = vmatprep.mubr.f32.mxu0 0.0
    %889 = vmatmul.mubr.f32.gmra.mxu0 %v670
    %v890 = vpop.f32.mrf.mxu0
    %v891 = vadd.f32 0.0, %v890
    %v892 = vpop.f32.mrf.mxu0
    %893 = vdwg.mxu0
    %v894 = vsel %vm589, %v666, -inf
    %895 = vmax.xlane.f32.xlu0 %v894
    %v896 = vpop.xlane.xlu0 %895
    %v897 = vsel %vm589, %v745, -inf
    %898 = vmax.xlane.f32.xlu0 %v897
    %v899 = vpop.xlane.xlu0 %898
    %vm900 = vcmask 64512
    %v901 = vsel %vm900, %v818, -inf
    %902 = vmax.xlane.f32.xlu0 %v901
    %v903 = vpop.xlane.xlu0 %902
    %v904 = vsel %vm900, %v891, -inf
    %905 = vmax.xlane.f32.xlu0 %v904
    %v906 = vpop.xlane.xlu0 %905
    %v907 = vmax.f32 %v896, %v903
    %v908 = vmax.f32 %v899, %v906
    %v909 = vsub.f32 %v666, %v907
    %v910 = vsub.f32 %v745, %v908
    %v911 = vmul.f32 %v909, 1.442695
    %v912 = vpow.pop %v911
    %v913 = vmul.f32 %v910, 1.442695
    %v914 = vpow.pop %v913
    %v915 = vsub.f32 %v818, %v907
    %v916 = vsub.f32 %v891, %v908
    %v917 = vmul.f32 %v915, 1.442695
    %v918 = vpow.pop %v917
    %v919 = vmul.f32 %v916, 1.442695
    %v920 = vpow.pop %v919
    %v921 = vsel %vm589, %v912, 0.0
    %922 = vadd.xlane.f32.xlu0 %v921
    %v923 = vpop.xlane.xlu0 %922
    %v924 = vsel %vm589, %v914, 0.0
    %925 = vadd.xlane.f32.xlu0 %v924
    %v926 = vpop.xlane.xlu0 %925
    %v927 = vsel %vm900, %v918, 0.0
    %928 = vadd.xlane.f32.xlu0 %v927
    %v929 = vpop.xlane.xlu0 %928
    %v930 = vsel %vm900, %v920, 0.0
    %931 = vadd.xlane.f32.xlu0 %v930
    %v932 = vpop.xlane.xlu0 %931
    %v933 = vadd.f32 %v923, %v929
    %v934 = vadd.f32 %v926, %v932
    %v936 = vsel %vm900, %v918, 0
    %938 = vmatprep.subr.mxu0 0.0
    %939 = vmatpush1.msra.mxu0 0.0
    %940 = vmatprep.subr.mxu0 0.0
    %941 = vmatpush1.msra.mxu0 0.0
    %942 = vmatprep.subr.mxu0 0.0
    %943 = vmatpush1.msra.mxu0 0.0
    %944 = vmatprep.subr.mxu0 0.0
    %945 = vmatpush1.msra.mxu0 0.0
    %946 = vmatprep.subr.mxu0 0.0
    %947 = vmatpush1.msra.mxu0 0.0
    %948 = vmatprep.subr.mxu0 0.0
    %949 = vmatpush1.msra.mxu0 0.0
    %950 = vmatprep.subr.mxu0 0.0
    %951 = vmatpush1.msra.mxu0 0.0
    %952 = vmatprep.subr.mxu0 0.0
    %953 = vmatpush1.msra.mxu0 0.0
    %954 = vmatprep.subr.mxu0 0.0
    %955 = vmatpush1.msra.mxu0 0.0
    %956 = vmatprep.subr.mxu0 0.0
    %957 = vmatpush1.msra.mxu0 0.0
    %958 = vmatprep.subr.mxu0 0.0
    %959 = vmatpush1.msra.mxu0 0.0
    %960 = vmatprep.subr.mxu0 0.0
    %961 = vmatpush1.msra.mxu0 0.0
    %962 = vmatprep.subr.mxu0 0.0
    %963 = vmatpush1.msra.mxu0 0.0
    %964 = vmatprep.subr.mxu0 0.0
    %965 = vmatpush1.msra.mxu0 0.0
    %966 = vmatprep.subr.mxu0 0.0
    %967 = vmatpush1.msra.mxu0 0.0
    %968 = vmatprep.subr.mxu0 0.0
    %969 = vmatpush1.msra.mxu0 %v399
    %970 = vmatprep.subr.mxu0 0.0
    %971 = vmatpush2.msra.mxu0 0.0
    %972 = vmatprep.subr.mxu0 0.0
    %973 = vmatpush2.msra.mxu0 0.0
    %974 = vmatprep.subr.mxu0 0.0
    %975 = vmatpush2.msra.mxu0 0.0
    %976 = vmatprep.subr.mxu0 0.0
    %977 = vmatpush2.msra.mxu0 0.0
    %978 = vmatprep.subr.mxu0 0.0
    %979 = vmatpush2.msra.mxu0 0.0
    %980 = vmatprep.subr.mxu0 0.0
    %981 = vmatpush2.msra.mxu0 0.0
    %982 = vmatprep.subr.mxu0 0.0
    %983 = vmatpush2.msra.mxu0 0.0
    %984 = vmatprep.subr.mxu0 0.0
    %985 = vmatpush2.msra.mxu0 0.0
    %986 = vmatprep.subr.mxu0 0.0
    %987 = vmatpush2.msra.mxu0 0.0
    %988 = vmatprep.subr.mxu0 0.0
    %989 = vmatpush2.msra.mxu0 0.0
    %990 = vmatprep.subr.mxu0 0.0
    %991 = vmatpush2.msra.mxu0 0.0
    %992 = vmatprep.subr.mxu0 0.0
    %993 = vmatpush2.msra.mxu0 0.0
    %994 = vmatprep.subr.mxu0 0.0
    %995 = vmatpush2.msra.mxu0 0.0
    %996 = vmatprep.subr.mxu0 0.0
    %997 = vmatpush2.msra.mxu0 0.0
    %998 = vmatprep.subr.mxu0 0.0
    %999 = vmatpush2.msra.mxu0 0.0
    %1000 = vmatprep.subr.mxu0 0.0
    %1001 = vmatpush2.msra.mxu0 0.0
    %1002 = vmatprep.mubr.f32.mxu0 0.0
    %1003 = vmatmul.mubr.f32.gmra.mxu0 %v936
    %v1004 = vpop.f32.mrf.mxu0
    %v1005 = vadd.f32 0.0, %v1004
    %v1006 = vpop.f32.mrf.mxu0
    %1007 = vdwg.mxu0
    %v1009 = vsel %vm900, %v920, 0
    %1011 = vmatprep.subr.mxu0 0.0
    %1012 = vmatpush1.msra.mxu0 0.0
    %1013 = vmatprep.subr.mxu0 0.0
    %1014 = vmatpush1.msra.mxu0 0.0
    %1015 = vmatprep.subr.mxu0 0.0
    %1016 = vmatpush1.msra.mxu0 0.0
    %1017 = vmatprep.subr.mxu0 0.0
    %1018 = vmatpush1.msra.mxu0 0.0
    %1019 = vmatprep.subr.mxu0 0.0
    %1020 = vmatpush1.msra.mxu0 0.0
    %1021 = vmatprep.subr.mxu0 0.0
    %1022 = vmatpush1.msra.mxu0 0.0
    %1023 = vmatprep.subr.mxu0 0.0
    %1024 = vmatpush1.msra.mxu0 0.0
    %1025 = vmatprep.subr.mxu0 0.0
    %1026 = vmatpush1.msra.mxu0 0.0
    %1027 = vmatprep.subr.mxu0 0.0
    %1028 = vmatpush1.msra.mxu0 0.0
    %1029 = vmatprep.subr.mxu0 0.0
    %1030 = vmatpush1.msra.mxu0 0.0
    %1031 = vmatprep.subr.mxu0 0.0
    %1032 = vmatpush1.msra.mxu0 0.0
    %1033 = vmatprep.subr.mxu0 0.0
    %1034 = vmatpush1.msra.mxu0 0.0
    %1035 = vmatprep.subr.mxu0 0.0
    %1036 = vmatpush1.msra.mxu0 0.0
    %1037 = vmatprep.subr.mxu0 0.0
    %1038 = vmatpush1.msra.mxu0 0.0
    %1039 = vmatprep.subr.mxu0 0.0
    %1040 = vmatpush1.msra.mxu0 0.0
    %1041 = vmatprep.subr.mxu0 0.0
    %1042 = vmatpush1.msra.mxu0 %v404
    %1043 = vmatprep.subr.mxu0 0.0
    %1044 = vmatpush2.msra.mxu0 0.0
    %1045 = vmatprep.subr.mxu0 0.0
    %1046 = vmatpush2.msra.mxu0 0.0
    %1047 = vmatprep.subr.mxu0 0.0
    %1048 = vmatpush2.msra.mxu0 0.0
    %1049 = vmatprep.subr.mxu0 0.0
    %1050 = vmatpush2.msra.mxu0 0.0
    %1051 = vmatprep.subr.mxu0 0.0
    %1052 = vmatpush2.msra.mxu0 0.0
    %1053 = vmatprep.subr.mxu0 0.0
    %1054 = vmatpush2.msra.mxu0 0.0
    %1055 = vmatprep.subr.mxu0 0.0
    %1056 = vmatpush2.msra.mxu0 0.0
    %1057 = vmatprep.subr.mxu0 0.0
    %1058 = vmatpush2.msra.mxu0 0.0
    %1059 = vmatprep.subr.mxu0 0.0
    %1060 = vmatpush2.msra.mxu0 0.0
    %1061 = vmatprep.subr.mxu0 0.0
    %1062 = vmatpush2.msra.mxu0 0.0
    %1063 = vmatprep.subr.mxu0 0.0
    %1064 = vmatpush2.msra.mxu0 0.0
    %1065 = vmatprep.subr.mxu0 0.0
    %1066 = vmatpush2.msra.mxu0 0.0
    %1067 = vmatprep.subr.mxu0 0.0
    %1068 = vmatpush2.msra.mxu0 0.0
    %1069 = vmatprep.subr.mxu0 0.0
    %1070 = vmatpush2.msra.mxu0 0.0
    %1071 = vmatprep.subr.mxu0 0.0
    %1072 = vmatpush2.msra.mxu0 0.0
    %1073 = vmatprep.subr.mxu0 0.0
    %1074 = vmatpush2.msra.mxu0 0.0
    %1075 = vmatprep.mubr.f32.mxu0 0.0
    %1076 = vmatmul.mubr.f32.gmra.mxu0 %v1009
    %v1077 = vpop.f32.mrf.mxu0
    %v1078 = vadd.f32 0.0, %v1077
    %v1079 = vpop.f32.mrf.mxu0
    %1080 = vdwg.mxu0
    %v1082 = vsel %vm589, %v912, 0
    %1084 = vmatprep.subr.mxu0 0.0
    %1085 = vmatpush1.msra.mxu0 0.0
    %1086 = vmatprep.subr.mxu0 0.0
    %1087 = vmatpush1.msra.mxu0 0.0
    %1088 = vmatprep.subr.mxu0 0.0
    %1089 = vmatpush1.msra.mxu0 0.0
    %1090 = vmatprep.subr.mxu0 0.0
    %1091 = vmatpush1.msra.mxu0 0.0
    %1092 = vmatprep.subr.mxu0 0.0
    %1093 = vmatpush1.msra.mxu0 0.0
    %1094 = vmatprep.subr.mxu0 0.0
    %1095 = vmatpush1.msra.mxu0 0.0
    %1096 = vmatprep.subr.mxu0 0.0
    %1097 = vmatpush1.msra.mxu0 0.0
    %1098 = vmatprep.subr.mxu0 0.0
    %1099 = vmatpush1.msra.mxu0 0.0
    %1100 = vmatprep.subr.mxu0 0.0
    %1101 = vmatpush1.msra.mxu0 0.0
    %1102 = vmatprep.subr.mxu0 0.0
    %1103 = vmatpush1.msra.mxu0 0.0
    %1104 = vmatprep.subr.mxu0 0.0
    %1105 = vmatpush1.msra.mxu0 0.0
    %1106 = vmatprep.subr.mxu0 0.0
    %1107 = vmatpush1.msra.mxu0 0.0
    %1108 = vmatprep.subr.mxu0 0.0
    %1109 = vmatpush1.msra.mxu0 0.0
    %1110 = vmatprep.subr.mxu0 0.0
    %1111 = vmatpush1.msra.mxu0 0.0
    %1112 = vmatprep.subr.mxu0 0.0
    %1113 = vmatpush1.msra.mxu0 %v576
    %1114 = vmatprep.subr.mxu0 0.0
    %1115 = vmatpush1.msra.mxu0 %v571
    %1116 = vmatprep.subr.mxu0 0.0
    %1117 = vmatpush2.msra.mxu0 0.0
    %1118 = vmatprep.subr.mxu0 0.0
    %1119 = vmatpush2.msra.mxu0 0.0
    %1120 = vmatprep.subr.mxu0 0.0
    %1121 = vmatpush2.msra.mxu0 0.0
    %1122 = vmatprep.subr.mxu0 0.0
    %1123 = vmatpush2.msra.mxu0 0.0
    %1124 = vmatprep.subr.mxu0 0.0
    %1125 = vmatpush2.msra.mxu0 0.0
    %1126 = vmatprep.subr.mxu0 0.0
    %1127 = vmatpush2.msra.mxu0 0.0
    %1128 = vmatprep.subr.mxu0 0.0
    %1129 = vmatpush2.msra.mxu0 0.0
    %1130 = vmatprep.subr.mxu0 0.0
    %1131 = vmatpush2.msra.mxu0 0.0
    %1132 = vmatprep.subr.mxu0 0.0
    %1133 = vmatpush2.msra.mxu0 0.0
    %1134 = vmatprep.subr.mxu0 0.0
    %1135 = vmatpush2.msra.mxu0 0.0
    %1136 = vmatprep.subr.mxu0 0.0
    %1137 = vmatpush2.msra.mxu0 0.0
    %1138 = vmatprep.subr.mxu0 0.0
    %1139 = vmatpush2.msra.mxu0 0.0
    %1140 = vmatprep.subr.mxu0 0.0
    %1141 = vmatpush2.msra.mxu0 0.0
    %1142 = vmatprep.subr.mxu0 0.0
    %1143 = vmatpush2.msra.mxu0 0.0
    %1144 = vmatprep.subr.mxu0 0.0
    %1145 = vmatpush2.msra.mxu0 0.0
    %1146 = vmatprep.subr.mxu0 0.0
    %1147 = vmatpush2.msra.mxu0 0.0
    %1148 = vmatprep.mubr.f32.mxu0 0.0
    %1149 = vmatmul.mubr.f32.gmra.mxu0 %v1082
    %v1150 = vpop.f32.mrf.mxu0
    %v1151 = vadd.f32 %v1005, %v1150
    %v1152 = vpop.f32.mrf.mxu0
    %1153 = vdwg.mxu0
    %v1155 = vsel %vm589, %v914, 0
    %1157 = vmatprep.subr.mxu0 0.0
    %1158 = vmatpush1.msra.mxu0 0.0
    %1159 = vmatprep.subr.mxu0 0.0
    %1160 = vmatpush1.msra.mxu0 0.0
    %1161 = vmatprep.subr.mxu0 0.0
    %1162 = vmatpush1.msra.mxu0 0.0
    %1163 = vmatprep.subr.mxu0 0.0
    %1164 = vmatpush1.msra.mxu0 0.0
    %1165 = vmatprep.subr.mxu0 0.0
    %1166 = vmatpush1.msra.mxu0 0.0
    %1167 = vmatprep.subr.mxu0 0.0
    %1168 = vmatpush1.msra.mxu0 0.0
    %1169 = vmatprep.subr.mxu0 0.0
    %1170 = vmatpush1.msra.mxu0 0.0
    %1171 = vmatprep.subr.mxu0 0.0
    %1172 = vmatpush1.msra.mxu0 0.0
    %1173 = vmatprep.subr.mxu0 0.0
    %1174 = vmatpush1.msra.mxu0 0.0
    %1175 = vmatprep.subr.mxu0 0.0
    %1176 = vmatpush1.msra.mxu0 0.0
    %1177 = vmatprep.subr.mxu0 0.0
    %1178 = vmatpush1.msra.mxu0 0.0
    %1179 = vmatprep.subr.mxu0 0.0
    %1180 = vmatpush1.msra.mxu0 0.0
    %1181 = vmatprep.subr.mxu0 0.0
    %1182 = vmatpush1.msra.mxu0 0.0
    %1183 = vmatprep.subr.mxu0 0.0
    %1184 = vmatpush1.msra.mxu0 0.0
    %1185 = vmatprep.subr.mxu0 0.0
    %1186 = vmatpush1.msra.mxu0 %v586
    %1187 = vmatprep.subr.mxu0 0.0
    %1188 = vmatpush1.msra.mxu0 %v581
    %1189 = vmatprep.subr.mxu0 0.0
    %1190 = vmatpush2.msra.mxu0 0.0
    %1191 = vmatprep.subr.mxu0 0.0
    %1192 = vmatpush2.msra.mxu0 0.0
    %1193 = vmatprep.subr.mxu0 0.0
    %1194 = vmatpush2.msra.mxu0 0.0
    %1195 = vmatprep.subr.mxu0 0.0
    %1196 = vmatpush2.msra.mxu0 0.0
    %1197 = vmatprep.subr.mxu0 0.0
    %1198 = vmatpush2.msra.mxu0 0.0
    %1199 = vmatprep.subr.mxu0 0.0
    %1200 = vmatpush2.msra.mxu0 0.0
    %1201 = vmatprep.subr.mxu0 0.0
    %1202 = vmatpush2.msra.mxu0 0.0
    %1203 = vmatprep.subr.mxu0 0.0
    %1204 = vmatpush2.msra.mxu0 0.0
    %1205 = vmatprep.subr.mxu0 0.0
    %1206 = vmatpush2.msra.mxu0 0.0
    %1207 = vmatprep.subr.mxu0 0.0
    %1208 = vmatpush2.msra.mxu0 0.0
    %1209 = vmatprep.subr.mxu0 0.0
    %1210 = vmatpush2.msra.mxu0 0.0
    %1211 = vmatprep.subr.mxu0 0.0
    %1212 = vmatpush2.msra.mxu0 0.0
    %1213 = vmatprep.subr.mxu0 0.0
    %1214 = vmatpush2.msra.mxu0 0.0
    %1215 = vmatprep.subr.mxu0 0.0
    %1216 = vmatpush2.msra.mxu0 0.0
    %1217 = vmatprep.subr.mxu0 0.0
    %1218 = vmatpush2.msra.mxu0 0.0
    %1219 = vmatprep.subr.mxu0 0.0
    %1220 = vmatpush2.msra.mxu0 0.0
    %1221 = vmatprep.mubr.f32.mxu0 0.0
    %1222 = vmatmul.mubr.f32.gmra.mxu0 %v1155
    %v1223 = vpop.f32.mrf.mxu0
    %v1224 = vadd.f32 %v1078, %v1223
    %v1225 = vpop.f32.mrf.mxu0
    %1226 = vdwg.mxu0
    %v1227 = vrcp.pop %v933
    %v1228 = vrcp.pop %v934
    %v1229 = vmul.f32 %v1151, %v1227
    %v1230 = vmul.f32 %v1224, %v1228
    %s1231 = scalar_lea.vmem %s6, 32
    %v1232 = vld [vmem:[%s1231] sm:$0xff]
    %v1233 = vld [vmem:[%s1231 + $0x8] sm:$0xff]
    %v1234 = vld [vmem:[%s1231 + $0x10] sm:$0xff]
    %v1235 = vld [vmem:[%s1231 + $0x18] sm:$0xff]
    %s1236 = scalar_lea.vmem %s7, 32
    %v1237 = vld [vmem:[%s1236] sm:$0xff]
    %v1238 = vld [vmem:[%s1236 + $0x8] sm:$0xff]
    %v1239 = vld [vmem:[%s1236 + $0x10] sm:$0xff]
    %v1240 = vld [vmem:[%s1236 + $0x18] sm:$0xff]
    %s1241 = scalar_lea.vmem %s8, 32
    %v1242 = vld [vmem:[%s1241] sm:$0xff]
    %v1243 = vld [vmem:[%s1241 + $0x8] sm:$0xff]
    %v1244 = vld [vmem:[%s1241 + $0x10] sm:$0xff]
    %v1245 = vld [vmem:[%s1241 + $0x18] sm:$0xff]
    %s1246 = scalar_lea.vmem %s9, 16
    %v1247 = vld [vmem:[%s1246] sm:$0xff]
    %v1248 = vld [vmem:[%s1246 + $0x8] sm:$0xff]
    %1249 = vmatprep.subr.mxu0 0.0
    %1250 = vmatpush1.msra.mxu0 0.0
    %1251 = vmatprep.subr.mxu0 0.0
    %1252 = vmatpush1.msra.mxu0 0.0
    %1253 = vmatprep.subr.mxu0 0.0
    %1254 = vmatpush1.msra.mxu0 0.0
    %1255 = vmatprep.subr.mxu0 0.0
    %1256 = vmatpush1.msra.mxu0 0.0
    %1257 = vmatprep.subr.mxu0 0.0
    %1258 = vmatpush1.msra.mxu0 0.0
    %1259 = vmatprep.subr.mxu0 0.0
    %1260 = vmatpush1.msra.mxu0 0.0
    %1261 = vmatprep.subr.mxu0 0.0
    %1262 = vmatpush1.msra.mxu0 0.0
    %1263 = vmatprep.subr.mxu0 0.0
    %1264 = vmatpush1.msra.mxu0 0.0
    %1265 = vmatprep.subr.mxu0 0.0
    %1266 = vmatpush1.msra.mxu0 0.0
    %1267 = vmatprep.subr.mxu0 0.0
    %1268 = vmatpush1.msra.mxu0 0.0
    %1269 = vmatprep.subr.mxu0 0.0
    %1270 = vmatpush1.msra.mxu0 0.0
    %1271 = vmatprep.subr.mxu0 0.0
    %1272 = vmatpush1.msra.mxu0 0.0
    %1273 = vmatprep.subr.mxu0 0.0
    %1274 = vmatpush1.msra.mxu0 %v1235
    %1275 = vmatprep.subr.mxu0 0.0
    %1276 = vmatpush1.msra.mxu0 %v1234
    %1277 = vmatprep.subr.mxu0 0.0
    %1278 = vmatpush1.msra.mxu0 %v1233
    %1279 = vmatprep.subr.mxu0 0.0
    %1280 = vmatpush1.msra.mxu0 %v1232
    %1281 = vmatprep.subr.mxu0 0.0
    %1282 = vmatpush2.msra.mxu0 0.0
    %1283 = vmatprep.subr.mxu0 0.0
    %1284 = vmatpush2.msra.mxu0 0.0
    %1285 = vmatprep.subr.mxu0 0.0
    %1286 = vmatpush2.msra.mxu0 0.0
    %1287 = vmatprep.subr.mxu0 0.0
    %1288 = vmatpush2.msra.mxu0 0.0
    %1289 = vmatprep.subr.mxu0 0.0
    %1290 = vmatpush2.msra.mxu0 0.0
    %1291 = vmatprep.subr.mxu0 0.0
    %1292 = vmatpush2.msra.mxu0 0.0
    %1293 = vmatprep.subr.mxu0 0.0
    %1294 = vmatpush2.msra.mxu0 0.0
    %1295 = vmatprep.subr.mxu0 0.0
    %1296 = vmatpush2.msra.mxu0 0.0
    %1297 = vmatprep.subr.mxu0 0.0
    %1298 = vmatpush2.msra.mxu0 0.0
    %1299 = vmatprep.subr.mxu0 0.0
    %1300 = vmatpush2.msra.mxu0 0.0
    %1301 = vmatprep.subr.mxu0 0.0
    %1302 = vmatpush2.msra.mxu0 0.0
    %1303 = vmatprep.subr.mxu0 0.0
    %1304 = vmatpush2.msra.mxu0 0.0
    %1305 = vmatprep.subr.mxu0 0.0
    %1306 = vmatpush2.msra.mxu0 0.0
    %1307 = vmatprep.subr.mxu0 0.0
    %1308 = vmatpush2.msra.mxu0 0.0
    %1309 = vmatprep.subr.mxu0 0.0
    %1310 = vmatpush2.msra.mxu0 0.0
    %1311 = vmatprep.subr.mxu0 0.0
    %1312 = vmatpush2.msra.mxu0 0.0
    %1313 = vmatprep.mubr.f32.mxu0 0.0
    %1314 = vmatmul.mubr.f32.gmra.mxu0 %v177
    %v1315 = vpop.f32.mrf.mxu0
    %v1316 = vadd.f32 0.0, %v1315
    %v1317 = vpop.f32.mrf.mxu0
    %1318 = vmatprep.mubr.f32.mxu0 0.0
    %1319 = vmatmul.mubr.f32.gmra.mxu0 %v180
    %v1320 = vpop.f32.mrf.mxu0
    %v1321 = vadd.f32 0.0, %v1320
    %v1322 = vpop.f32.mrf.mxu0
    %1323 = vdwg.mxu0
    %1324 = vmatprep.subr.mxu0 0.0
    %1325 = vmatpush1.msra.mxu0 0.0
    %1326 = vmatprep.subr.mxu0 0.0
    %1327 = vmatpush1.msra.mxu0 0.0
    %1328 = vmatprep.subr.mxu0 0.0
    %1329 = vmatpush1.msra.mxu0 0.0
    %1330 = vmatprep.subr.mxu0 0.0
    %1331 = vmatpush1.msra.mxu0 0.0
    %1332 = vmatprep.subr.mxu0 0.0
    %1333 = vmatpush1.msra.mxu0 0.0
    %1334 = vmatprep.subr.mxu0 0.0
    %1335 = vmatpush1.msra.mxu0 0.0
    %1336 = vmatprep.subr.mxu0 0.0
    %1337 = vmatpush1.msra.mxu0 0.0
    %1338 = vmatprep.subr.mxu0 0.0
    %1339 = vmatpush1.msra.mxu0 0.0
    %1340 = vmatprep.subr.mxu0 0.0
    %1341 = vmatpush1.msra.mxu0 0.0
    %1342 = vmatprep.subr.mxu0 0.0
    %1343 = vmatpush1.msra.mxu0 0.0
    %1344 = vmatprep.subr.mxu0 0.0
    %1345 = vmatpush1.msra.mxu0 0.0
    %1346 = vmatprep.subr.mxu0 0.0
    %1347 = vmatpush1.msra.mxu0 0.0
    %1348 = vmatprep.subr.mxu0 0.0
    %1349 = vmatpush1.msra.mxu0 %v1240
    %1350 = vmatprep.subr.mxu0 0.0
    %1351 = vmatpush1.msra.mxu0 %v1239
    %1352 = vmatprep.subr.mxu0 0.0
    %1353 = vmatpush1.msra.mxu0 %v1238
    %1354 = vmatprep.subr.mxu0 0.0
    %1355 = vmatpush1.msra.mxu0 %v1237
    %1356 = vmatprep.subr.mxu0 0.0
    %1357 = vmatpush2.msra.mxu0 0.0
    %1358 = vmatprep.subr.mxu0 0.0
    %1359 = vmatpush2.msra.mxu0 0.0
    %1360 = vmatprep.subr.mxu0 0.0
    %1361 = vmatpush2.msra.mxu0 0.0
    %1362 = vmatprep.subr.mxu0 0.0
    %1363 = vmatpush2.msra.mxu0 0.0
    %1364 = vmatprep.subr.mxu0 0.0
    %1365 = vmatpush2.msra.mxu0 0.0
    %1366 = vmatprep.subr.mxu0 0.0
    %1367 = vmatpush2.msra.mxu0 0.0
    %1368 = vmatprep.subr.mxu0 0.0
    %1369 = vmatpush2.msra.mxu0 0.0
    %1370 = vmatprep.subr.mxu0 0.0
    %1371 = vmatpush2.msra.mxu0 0.0
    %1372 = vmatprep.subr.mxu0 0.0
    %1373 = vmatpush2.msra.mxu0 0.0
    %1374 = vmatprep.subr.mxu0 0.0
    %1375 = vmatpush2.msra.mxu0 0.0
    %1376 = vmatprep.subr.mxu0 0.0
    %1377 = vmatpush2.msra.mxu0 0.0
    %1378 = vmatprep.subr.mxu0 0.0
    %1379 = vmatpush2.msra.mxu0 0.0
    %1380 = vmatprep.subr.mxu0 0.0
    %1381 = vmatpush2.msra.mxu0 0.0
    %1382 = vmatprep.subr.mxu0 0.0
    %1383 = vmatpush2.msra.mxu0 0.0
    %1384 = vmatprep.subr.mxu0 0.0
    %1385 = vmatpush2.msra.mxu0 0.0
    %1386 = vmatprep.subr.mxu0 0.0
    %1387 = vmatpush2.msra.mxu0 0.0
    %1388 = vmatprep.mubr.f32.mxu0 0.0
    %1389 = vmatmul.mubr.f32.gmra.mxu0 %v177
    %v1390 = vpop.f32.mrf.mxu0
    %v1391 = vadd.f32 0.0, %v1390
    %v1392 = vpop.f32.mrf.mxu0
    %1393 = vmatprep.mubr.f32.mxu0 0.0
    %1394 = vmatmul.mubr.f32.gmra.mxu0 %v180
    %v1395 = vpop.f32.mrf.mxu0
    %v1396 = vadd.f32 0.0, %v1395
    %v1397 = vpop.f32.mrf.mxu0
    %1398 = vdwg.mxu0
    %1399 = vmatprep.subr.mxu0 0.0
    %1400 = vmatpush1.msra.mxu0 0.0
    %1401 = vmatprep.subr.mxu0 0.0
    %1402 = vmatpush1.msra.mxu0 0.0
    %1403 = vmatprep.subr.mxu0 0.0
    %1404 = vmatpush1.msra.mxu0 0.0
    %1405 = vmatprep.subr.mxu0 0.0
    %1406 = vmatpush1.msra.mxu0 0.0
    %1407 = vmatprep.subr.mxu0 0.0
    %1408 = vmatpush1.msra.mxu0 0.0
    %1409 = vmatprep.subr.mxu0 0.0
    %1410 = vmatpush1.msra.mxu0 0.0
    %1411 = vmatprep.subr.mxu0 0.0
    %1412 = vmatpush1.msra.mxu0 0.0
    %1413 = vmatprep.subr.mxu0 0.0
    %1414 = vmatpush1.msra.mxu0 0.0
    %1415 = vmatprep.subr.mxu0 0.0
    %1416 = vmatpush1.msra.mxu0 0.0
    %1417 = vmatprep.subr.mxu0 0.0
    %1418 = vmatpush1.msra.mxu0 0.0
    %1419 = vmatprep.subr.mxu0 0.0
    %1420 = vmatpush1.msra.mxu0 0.0
    %1421 = vmatprep.subr.mxu0 0.0
    %1422 = vmatpush1.msra.mxu0 0.0
    %1423 = vmatprep.subr.mxu0 0.0
    %1424 = vmatpush1.msra.mxu0 %v1245
    %1425 = vmatprep.subr.mxu0 0.0
    %1426 = vmatpush1.msra.mxu0 %v1244
    %1427 = vmatprep.subr.mxu0 0.0
    %1428 = vmatpush1.msra.mxu0 %v1243
    %1429 = vmatprep.subr.mxu0 0.0
    %1430 = vmatpush1.msra.mxu0 %v1242
    %1431 = vmatprep.subr.mxu0 0.0
    %1432 = vmatpush2.msra.mxu0 0.0
    %1433 = vmatprep.subr.mxu0 0.0
    %1434 = vmatpush2.msra.mxu0 0.0
    %1435 = vmatprep.subr.mxu0 0.0
    %1436 = vmatpush2.msra.mxu0 0.0
    %1437 = vmatprep.subr.mxu0 0.0
    %1438 = vmatpush2.msra.mxu0 0.0
    %1439 = vmatprep.subr.mxu0 0.0
    %1440 = vmatpush2.msra.mxu0 0.0
    %1441 = vmatprep.subr.mxu0 0.0
    %1442 = vmatpush2.msra.mxu0 0.0
    %1443 = vmatprep.subr.mxu0 0.0
    %1444 = vmatpush2.msra.mxu0 0.0
    %1445 = vmatprep.subr.mxu0 0.0
    %1446 = vmatpush2.msra.mxu0 0.0
    %1447 = vmatprep.subr.mxu0 0.0
    %1448 = vmatpush2.msra.mxu0 0.0
    %1449 = vmatprep.subr.mxu0 0.0
    %1450 = vmatpush2.msra.mxu0 0.0
    %1451 = vmatprep.subr.mxu0 0.0
    %1452 = vmatpush2.msra.mxu0 0.0
    %1453 = vmatprep.subr.mxu0 0.0
    %1454 = vmatpush2.msra.mxu0 0.0
    %1455 = vmatprep.subr.mxu0 0.0
    %1456 = vmatpush2.msra.mxu0 0.0
    %1457 = vmatprep.subr.mxu0 0.0
    %1458 = vmatpush2.msra.mxu0 0.0
    %1459 = vmatprep.subr.mxu0 0.0
    %1460 = vmatpush2.msra.mxu0 0.0
    %1461 = vmatprep.subr.mxu0 0.0
    %1462 = vmatpush2.msra.mxu0 0.0
    %1463 = vmatprep.mubr.f32.mxu0 0.0
    %1464 = vmatmul.mubr.f32.gmra.mxu0 %v177
    %v1465 = vpop.f32.mrf.mxu0
    %v1466 = vadd.f32 0.0, %v1465
    %v1467 = vpop.f32.mrf.mxu0
    %1468 = vmatprep.mubr.f32.mxu0 0.0
    %1469 = vmatmul.mubr.f32.gmra.mxu0 %v180
    %v1470 = vpop.f32.mrf.mxu0
    %v1471 = vadd.f32 0.0, %v1470
    %v1472 = vpop.f32.mrf.mxu0
    %1473 = vdwg.mxu0
    %1474 = vmatprep.subr.mxu0 0.0
    %1475 = vmatpush1.msra.mxu0 0.0
    %1476 = vmatprep.subr.mxu0 0.0
    %1477 = vmatpush1.msra.mxu0 0.0
    %1478 = vmatprep.subr.mxu0 0.0
    %1479 = vmatpush1.msra.mxu0 0.0
    %1480 = vmatprep.subr.mxu0 0.0
    %1481 = vmatpush1.msra.mxu0 0.0
    %1482 = vmatprep.subr.mxu0 0.0
    %1483 = vmatpush1.msra.mxu0 0.0
    %1484 = vmatprep.subr.mxu0 0.0
    %1485 = vmatpush1.msra.mxu0 0.0
    %1486 = vmatprep.subr.mxu0 0.0
    %1487 = vmatpush1.msra.mxu0 0.0
    %1488 = vmatprep.subr.mxu0 0.0
    %1489 = vmatpush1.msra.mxu0 0.0
    %1490 = vmatprep.subr.mxu0 0.0
    %1491 = vmatpush1.msra.mxu0 0.0
    %1492 = vmatprep.subr.mxu0 0.0
    %1493 = vmatpush1.msra.mxu0 0.0
    %1494 = vmatprep.subr.mxu0 0.0
    %1495 = vmatpush1.msra.mxu0 0.0
    %1496 = vmatprep.subr.mxu0 0.0
    %1497 = vmatpush1.msra.mxu0 0.0
    %1498 = vmatprep.subr.mxu0 0.0
    %1499 = vmatpush1.msra.mxu0 %v1240
    %1500 = vmatprep.subr.mxu0 0.0
    %1501 = vmatpush1.msra.mxu0 %v1239
    %1502 = vmatprep.subr.mxu0 0.0
    %1503 = vmatpush1.msra.mxu0 %v1238
    %1504 = vmatprep.subr.mxu0 0.0
    %1505 = vmatpush1.msra.mxu0 %v1237
    %1506 = vmatprep.subr.mxu0 0.0
    %1507 = vmatpush2.msra.mxu0 0.0
    %1508 = vmatprep.subr.mxu0 0.0
    %1509 = vmatpush2.msra.mxu0 0.0
    %1510 = vmatprep.subr.mxu0 0.0
    %1511 = vmatpush2.msra.mxu0 0.0
    %1512 = vmatprep.subr.mxu0 0.0
    %1513 = vmatpush2.msra.mxu0 0.0
    %1514 = vmatprep.subr.mxu0 0.0
    %1515 = vmatpush2.msra.mxu0 0.0
    %1516 = vmatprep.subr.mxu0 0.0
    %1517 = vmatpush2.msra.mxu0 0.0
    %1518 = vmatprep.subr.mxu0 0.0
    %1519 = vmatpush2.msra.mxu0 0.0
    %1520 = vmatprep.subr.mxu0 0.0
    %1521 = vmatpush2.msra.mxu0 0.0
    %1522 = vmatprep.subr.mxu0 0.0
    %1523 = vmatpush2.msra.mxu0 0.0
    %1524 = vmatprep.subr.mxu0 0.0
    %1525 = vmatpush2.msra.mxu0 0.0
    %1526 = vmatprep.subr.mxu0 0.0
    %1527 = vmatpush2.msra.mxu0 0.0
    %1528 = vmatprep.subr.mxu0 0.0
    %1529 = vmatpush2.msra.mxu0 0.0
    %1530 = vmatprep.subr.mxu0 0.0
    %1531 = vmatpush2.msra.mxu0 0.0
    %1532 = vmatprep.subr.mxu0 0.0
    %1533 = vmatpush2.msra.mxu0 0.0
    %1534 = vmatprep.subr.mxu0 0.0
    %1535 = vmatpush2.msra.mxu0 0.0
    %1536 = vmatprep.subr.mxu0 0.0
    %1537 = vmatpush2.msra.mxu0 0.0
    %1538 = vmatprep.mubr.f32.mxu0 0.0
    %1539 = vmatmul.mubr.f32.gmra.mxu0 %v408
    %v1540 = vpop.f32.mrf.mxu0
    %v1541 = vadd.f32 0.0, %v1540
    %v1542 = vpop.f32.mrf.mxu0
    %1543 = vmatprep.mubr.f32.mxu0 0.0
    %1544 = vmatmul.mubr.f32.gmra.mxu0 %v411
    %v1545 = vpop.f32.mrf.mxu0
    %v1546 = vadd.f32 0.0, %v1545
    %v1547 = vpop.f32.mrf.mxu0
    %1548 = vmatprep.mubr.f32.mxu0 0.0
    %1549 = vmatmul.mubr.f32.gmra.mxu0 %v414
    %v1550 = vpop.f32.mrf.mxu0
    %v1551 = vadd.f32 0.0, %v1550
    %v1552 = vpop.f32.mrf.mxu0
    %1553 = vmatprep.mubr.f32.mxu0 0.0
    %1554 = vmatmul.mubr.f32.gmra.mxu0 %v417
    %v1555 = vpop.f32.mrf.mxu0
    %v1556 = vadd.f32 0.0, %v1555
    %v1557 = vpop.f32.mrf.mxu0
    %1558 = vdwg.mxu0
    %1559 = vmatprep.subr.mxu0 0.0
    %1560 = vmatpush1.msra.mxu0 0.0
    %1561 = vmatprep.subr.mxu0 0.0
    %1562 = vmatpush1.msra.mxu0 0.0
    %1563 = vmatprep.subr.mxu0 0.0
    %1564 = vmatpush1.msra.mxu0 0.0
    %1565 = vmatprep.subr.mxu0 0.0
    %1566 = vmatpush1.msra.mxu0 0.0
    %1567 = vmatprep.subr.mxu0 0.0
    %1568 = vmatpush1.msra.mxu0 0.0
    %1569 = vmatprep.subr.mxu0 0.0
    %1570 = vmatpush1.msra.mxu0 0.0
    %1571 = vmatprep.subr.mxu0 0.0
    %1572 = vmatpush1.msra.mxu0 0.0
    %1573 = vmatprep.subr.mxu0 0.0
    %1574 = vmatpush1.msra.mxu0 0.0
    %1575 = vmatprep.subr.mxu0 0.0
    %1576 = vmatpush1.msra.mxu0 0.0
    %1577 = vmatprep.subr.mxu0 0.0
    %1578 = vmatpush1.msra.mxu0 0.0
    %1579 = vmatprep.subr.mxu0 0.0
    %1580 = vmatpush1.msra.mxu0 0.0
    %1581 = vmatprep.subr.mxu0 0.0
    %1582 = vmatpush1.msra.mxu0 0.0
    %1583 = vmatprep.subr.mxu0 0.0
    %1584 = vmatpush1.msra.mxu0 %v1245
    %1585 = vmatprep.subr.mxu0 0.0
    %1586 = vmatpush1.msra.mxu0 %v1244
    %1587 = vmatprep.subr.mxu0 0.0
    %1588 = vmatpush1.msra.mxu0 %v1243
    %1589 = vmatprep.subr.mxu0 0.0
    %1590 = vmatpush1.msra.mxu0 %v1242
    %1591 = vmatprep.subr.mxu0 0.0
    %1592 = vmatpush2.msra.mxu0 0.0
    %1593 = vmatprep.subr.mxu0 0.0
    %1594 = vmatpush2.msra.mxu0 0.0
    %1595 = vmatprep.subr.mxu0 0.0
    %1596 = vmatpush2.msra.mxu0 0.0
    %1597 = vmatprep.subr.mxu0 0.0
    %1598 = vmatpush2.msra.mxu0 0.0
    %1599 = vmatprep.subr.mxu0 0.0
    %1600 = vmatpush2.msra.mxu0 0.0
    %1601 = vmatprep.subr.mxu0 0.0
    %1602 = vmatpush2.msra.mxu0 0.0
    %1603 = vmatprep.subr.mxu0 0.0
    %1604 = vmatpush2.msra.mxu0 0.0
    %1605 = vmatprep.subr.mxu0 0.0
    %1606 = vmatpush2.msra.mxu0 0.0
    %1607 = vmatprep.subr.mxu0 0.0
    %1608 = vmatpush2.msra.mxu0 0.0
    %1609 = vmatprep.subr.mxu0 0.0
    %1610 = vmatpush2.msra.mxu0 0.0
    %1611 = vmatprep.subr.mxu0 0.0
    %1612 = vmatpush2.msra.mxu0 0.0
    %1613 = vmatprep.subr.mxu0 0.0
    %1614 = vmatpush2.msra.mxu0 0.0
    %1615 = vmatprep.subr.mxu0 0.0
    %1616 = vmatpush2.msra.mxu0 0.0
    %1617 = vmatprep.subr.mxu0 0.0
    %1618 = vmatpush2.msra.mxu0 0.0
    %1619 = vmatprep.subr.mxu0 0.0
    %1620 = vmatpush2.msra.mxu0 0.0
    %1621 = vmatprep.subr.mxu0 0.0
    %1622 = vmatpush2.msra.mxu0 0.0
    %1623 = vmatprep.mubr.f32.mxu0 0.0
    %1624 = vmatmul.mubr.f32.gmra.mxu0 %v408
    %v1625 = vpop.f32.mrf.mxu0
    %v1626 = vadd.f32 0.0, %v1625
    %v1627 = vpop.f32.mrf.mxu0
    %1628 = vmatprep.mubr.f32.mxu0 0.0
    %1629 = vmatmul.mubr.f32.gmra.mxu0 %v411
    %v1630 = vpop.f32.mrf.mxu0
    %v1631 = vadd.f32 0.0, %v1630
    %v1632 = vpop.f32.mrf.mxu0
    %1633 = vmatprep.mubr.f32.mxu0 0.0
    %1634 = vmatmul.mubr.f32.gmra.mxu0 %v414
    %v1635 = vpop.f32.mrf.mxu0
    %v1636 = vadd.f32 0.0, %v1635
    %v1637 = vpop.f32.mrf.mxu0
    %1638 = vmatprep.mubr.f32.mxu0 0.0
    %1639 = vmatmul.mubr.f32.gmra.mxu0 %v417
    %v1640 = vpop.f32.mrf.mxu0
    %v1641 = vadd.f32 0.0, %v1640
    %v1642 = vpop.f32.mrf.mxu0
    %1643 = vdwg.mxu0
    %v1645 = vsel %vm589, %v1316, 0
    %v1648 = vsel %vm589, %v1541, 0
    %v1651 = vsel %vm589, %v1546, 0
    %1653 = vmatprep.subr.mxu0 0.0
    %1654 = vmatpush1.xpose.msra.mxu0 0.0
    %1655 = vmatprep.subr.mxu0 0.0
    %1656 = vmatpush1.xpose.msra.mxu0 0.0
    %1657 = vmatprep.subr.mxu0 0.0
    %1658 = vmatpush1.xpose.msra.mxu0 0.0
    %1659 = vmatprep.subr.mxu0 0.0
    %1660 = vmatpush1.xpose.msra.mxu0 0.0
    %1661 = vmatprep.subr.mxu0 0.0
    %1662 = vmatpush1.xpose.msra.mxu0 0.0
    %1663 = vmatprep.subr.mxu0 0.0
    %1664 = vmatpush1.xpose.msra.mxu0 0.0
    %1665 = vmatprep.subr.mxu0 0.0
    %1666 = vmatpush1.xpose.msra.mxu0 0.0
    %1667 = vmatprep.subr.mxu0 0.0
    %1668 = vmatpush1.xpose.msra.mxu0 0.0
    %1669 = vmatprep.subr.mxu0 0.0
    %1670 = vmatpush1.xpose.msra.mxu0 0.0
    %1671 = vmatprep.subr.mxu0 0.0
    %1672 = vmatpush1.xpose.msra.mxu0 0.0
    %1673 = vmatprep.subr.mxu0 0.0
    %1674 = vmatpush1.xpose.msra.mxu0 0.0
    %1675 = vmatprep.subr.mxu0 0.0
    %1676 = vmatpush1.xpose.msra.mxu0 0.0
    %1677 = vmatprep.subr.mxu0 0.0
    %1678 = vmatpush1.xpose.msra.mxu0 0.0
    %1679 = vmatprep.subr.mxu0 0.0
    %1680 = vmatpush1.xpose.msra.mxu0 0.0
    %1681 = vmatprep.subr.mxu0 0.0
    %1682 = vmatpush1.xpose.msra.mxu0 %v1651
    %1683 = vmatprep.subr.mxu0 0.0
    %1684 = vmatpush1.xpose.msra.mxu0 %v1648
    %1685 = vmatprep.subr.mxu0 0.0
    %1686 = vmatpush2.xpose.msra.mxu0 0.0
    %1687 = vmatprep.subr.mxu0 0.0
    %1688 = vmatpush2.xpose.msra.mxu0 0.0
    %1689 = vmatprep.subr.mxu0 0.0
    %1690 = vmatpush2.xpose.msra.mxu0 0.0
    %1691 = vmatprep.subr.mxu0 0.0
    %1692 = vmatpush2.xpose.msra.mxu0 0.0
    %1693 = vmatprep.subr.mxu0 0.0
    %1694 = vmatpush2.xpose.msra.mxu0 0.0
    %1695 = vmatprep.subr.mxu0 0.0
    %1696 = vmatpush2.xpose.msra.mxu0 0.0
    %1697 = vmatprep.subr.mxu0 0.0
    %1698 = vmatpush2.xpose.msra.mxu0 0.0
    %1699 = vmatprep.subr.mxu0 0.0
    %1700 = vmatpush2.xpose.msra.mxu0 0.0
    %1701 = vmatprep.subr.mxu0 0.0
    %1702 = vmatpush2.xpose.msra.mxu0 0.0
    %1703 = vmatprep.subr.mxu0 0.0
    %1704 = vmatpush2.xpose.msra.mxu0 0.0
    %1705 = vmatprep.subr.mxu0 0.0
    %1706 = vmatpush2.xpose.msra.mxu0 0.0
    %1707 = vmatprep.subr.mxu0 0.0
    %1708 = vmatpush2.xpose.msra.mxu0 0.0
    %1709 = vmatprep.subr.mxu0 0.0
    %1710 = vmatpush2.xpose.msra.mxu0 0.0
    %1711 = vmatprep.subr.mxu0 0.0
    %1712 = vmatpush2.xpose.msra.mxu0 0.0
    %1713 = vmatprep.subr.mxu0 0.0
    %1714 = vmatpush2.xpose.msra.mxu0 0.0
    %1715 = vmatprep.subr.mxu0 0.0
    %1716 = vmatpush2.xpose.msra.mxu0 0.0
    %1717 = vmatprep.mubr.f32.mxu0 0.0
    %1718 = vmatmul.mubr.f32.gmra.mxu0 %v1645
    %v1719 = vpop.f32.mrf.mxu0
    %v1720 = vadd.f32 0.0, %v1719
    %v1721 = vpop.f32.mrf.mxu0
    %1722 = vdwg.mxu0
    %v1724 = vsel %vm589, %v1321, 0
    %v1727 = vsel %vm589, %v1551, 0
    %v1730 = vsel %vm589, %v1556, 0
    %1732 = vmatprep.subr.mxu0 0.0
    %1733 = vmatpush1.xpose.msra.mxu0 0.0
    %1734 = vmatprep.subr.mxu0 0.0
    %1735 = vmatpush1.xpose.msra.mxu0 0.0
    %1736 = vmatprep.subr.mxu0 0.0
    %1737 = vmatpush1.xpose.msra.mxu0 0.0
    %1738 = vmatprep.subr.mxu0 0.0
    %1739 = vmatpush1.xpose.msra.mxu0 0.0
    %1740 = vmatprep.subr.mxu0 0.0
    %1741 = vmatpush1.xpose.msra.mxu0 0.0
    %1742 = vmatprep.subr.mxu0 0.0
    %1743 = vmatpush1.xpose.msra.mxu0 0.0
    %1744 = vmatprep.subr.mxu0 0.0
    %1745 = vmatpush1.xpose.msra.mxu0 0.0
    %1746 = vmatprep.subr.mxu0 0.0
    %1747 = vmatpush1.xpose.msra.mxu0 0.0
    %1748 = vmatprep.subr.mxu0 0.0
    %1749 = vmatpush1.xpose.msra.mxu0 0.0
    %1750 = vmatprep.subr.mxu0 0.0
    %1751 = vmatpush1.xpose.msra.mxu0 0.0
    %1752 = vmatprep.subr.mxu0 0.0
    %1753 = vmatpush1.xpose.msra.mxu0 0.0
    %1754 = vmatprep.subr.mxu0 0.0
    %1755 = vmatpush1.xpose.msra.mxu0 0.0
    %1756 = vmatprep.subr.mxu0 0.0
    %1757 = vmatpush1.xpose.msra.mxu0 0.0
    %1758 = vmatprep.subr.mxu0 0.0
    %1759 = vmatpush1.xpose.msra.mxu0 0.0
    %1760 = vmatprep.subr.mxu0 0.0
    %1761 = vmatpush1.xpose.msra.mxu0 %v1730
    %1762 = vmatprep.subr.mxu0 0.0
    %1763 = vmatpush1.xpose.msra.mxu0 %v1727
    %1764 = vmatprep.subr.mxu0 0.0
    %1765 = vmatpush2.xpose.msra.mxu0 0.0
    %1766 = vmatprep.subr.mxu0 0.0
    %1767 = vmatpush2.xpose.msra.mxu0 0.0
    %1768 = vmatprep.subr.mxu0 0.0
    %1769 = vmatpush2.xpose.msra.mxu0 0.0
    %1770 = vmatprep.subr.mxu0 0.0
    %1771 = vmatpush2.xpose.msra.mxu0 0.0
    %1772 = vmatprep.subr.mxu0 0.0
    %1773 = vmatpush2.xpose.msra.mxu0 0.0
    %1774 = vmatprep.subr.mxu0 0.0
    %1775 = vmatpush2.xpose.msra.mxu0 0.0
    %1776 = vmatprep.subr.mxu0 0.0
    %1777 = vmatpush2.xpose.msra.mxu0 0.0
    %1778 = vmatprep.subr.mxu0 0.0
    %1779 = vmatpush2.xpose.msra.mxu0 0.0
    %1780 = vmatprep.subr.mxu0 0.0
    %1781 = vmatpush2.xpose.msra.mxu0 0.0
    %1782 = vmatprep.subr.mxu0 0.0
    %1783 = vmatpush2.xpose.msra.mxu0 0.0
    %1784 = vmatprep.subr.mxu0 0.0
    %1785 = vmatpush2.xpose.msra.mxu0 0.0
    %1786 = vmatprep.subr.mxu0 0.0
    %1787 = vmatpush2.xpose.msra.mxu0 0.0
    %1788 = vmatprep.subr.mxu0 0.0
    %1789 = vmatpush2.xpose.msra.mxu0 0.0
    %1790 = vmatprep.subr.mxu0 0.0
    %1791 = vmatpush2.xpose.msra.mxu0 0.0
    %1792 = vmatprep.subr.mxu0 0.0
    %1793 = vmatpush2.xpose.msra.mxu0 0.0
    %1794 = vmatprep.subr.mxu0 0.0
    %1795 = vmatpush2.xpose.msra.mxu0 0.0
    %1796 = vmatprep.mubr.f32.mxu0 0.0
    %1797 = vmatmul.mubr.f32.gmra.mxu0 %v1724
    %v1798 = vpop.f32.mrf.mxu0
    %v1799 = vadd.f32 0.0, %v1798
    %v1800 = vpop.f32.mrf.mxu0
    %1801 = vdwg.mxu0
    %v1803 = vsel %vm589, %v1391, 0
    %1805 = vmatprep.subr.mxu0 0.0
    %1806 = vmatpush1.xpose.msra.mxu0 0.0
    %1807 = vmatprep.subr.mxu0 0.0
    %1808 = vmatpush1.xpose.msra.mxu0 0.0
    %1809 = vmatprep.subr.mxu0 0.0
    %1810 = vmatpush1.xpose.msra.mxu0 0.0
    %1811 = vmatprep.subr.mxu0 0.0
    %1812 = vmatpush1.xpose.msra.mxu0 0.0
    %1813 = vmatprep.subr.mxu0 0.0
    %1814 = vmatpush1.xpose.msra.mxu0 0.0
    %1815 = vmatprep.subr.mxu0 0.0
    %1816 = vmatpush1.xpose.msra.mxu0 0.0
    %1817 = vmatprep.subr.mxu0 0.0
    %1818 = vmatpush1.xpose.msra.mxu0 0.0
    %1819 = vmatprep.subr.mxu0 0.0
    %1820 = vmatpush1.xpose.msra.mxu0 0.0
    %1821 = vmatprep.subr.mxu0 0.0
    %1822 = vmatpush1.xpose.msra.mxu0 0.0
    %1823 = vmatprep.subr.mxu0 0.0
    %1824 = vmatpush1.xpose.msra.mxu0 0.0
    %1825 = vmatprep.subr.mxu0 0.0
    %1826 = vmatpush1.xpose.msra.mxu0 0.0
    %1827 = vmatprep.subr.mxu0 0.0
    %1828 = vmatpush1.xpose.msra.mxu0 0.0
    %1829 = vmatprep.subr.mxu0 0.0
    %1830 = vmatpush1.xpose.msra.mxu0 0.0
    %1831 = vmatprep.subr.mxu0 0.0
    %1832 = vmatpush1.xpose.msra.mxu0 0.0
    %1833 = vmatprep.subr.mxu0 0.0
    %1834 = vmatpush1.xpose.msra.mxu0 0.0
    %1835 = vmatprep.subr.mxu0 0.0
    %1836 = vmatpush1.xpose.msra.mxu0 %v1803
    %1837 = vmatprep.subr.mxu0 0.0
    %1838 = vmatpush2.xpose.msra.mxu0 0.0
    %1839 = vmatprep.subr.mxu0 0.0
    %1840 = vmatpush2.xpose.msra.mxu0 0.0
    %1841 = vmatprep.subr.mxu0 0.0
    %1842 = vmatpush2.xpose.msra.mxu0 0.0
    %1843 = vmatprep.subr.mxu0 0.0
    %1844 = vmatpush2.xpose.msra.mxu0 0.0
    %1845 = vmatprep.subr.mxu0 0.0
    %1846 = vmatpush2.xpose.msra.mxu0 0.0
    %1847 = vmatprep.subr.mxu0 0.0
    %1848 = vmatpush2.xpose.msra.mxu0 0.0
    %1849 = vmatprep.subr.mxu0 0.0
    %1850 = vmatpush2.xpose.msra.mxu0 0.0
    %1851 = vmatprep.subr.mxu0 0.0
    %1852 = vmatpush2.xpose.msra.mxu0 0.0
    %1853 = vmatprep.subr.mxu0 0.0
    %1854 = vmatpush2.xpose.msra.mxu0 0.0
    %1855 = vmatprep.subr.mxu0 0.0
    %1856 = vmatpush2.xpose.msra.mxu0 0.0
    %1857 = vmatprep.subr.mxu0 0.0
    %1858 = vmatpush2.xpose.msra.mxu0 0.0
    %1859 = vmatprep.subr.mxu0 0.0
    %1860 = vmatpush2.xpose.msra.mxu0 0.0
    %1861 = vmatprep.subr.mxu0 0.0
    %1862 = vmatpush2.xpose.msra.mxu0 0.0
    %1863 = vmatprep.subr.mxu0 0.0
    %1864 = vmatpush2.xpose.msra.mxu0 0.0
    %1865 = vmatprep.subr.mxu0 0.0
    %1866 = vmatpush2.xpose.msra.mxu0 0.0
    %1867 = vmatprep.subr.mxu0 0.0
    %1868 = vmatpush2.xpose.msra.mxu0 0.0
    %1869 = vmatprep.mubr.f32.mxu0 0.0
    %1870 = vmatmul.mubr.f32.gmra.mxu0 %v1645
    %v1871 = vpop.f32.mrf.mxu0
    %v1872 = vadd.f32 0.0, %v1871
    %v1873 = vpop.f32.mrf.mxu0
    %1874 = vdwg.mxu0
    %v1876 = vsel %vm589, %v1396, 0
    %1878 = vmatprep.subr.mxu0 0.0
    %1879 = vmatpush1.xpose.msra.mxu0 0.0
    %1880 = vmatprep.subr.mxu0 0.0
    %1881 = vmatpush1.xpose.msra.mxu0 0.0
    %1882 = vmatprep.subr.mxu0 0.0
    %1883 = vmatpush1.xpose.msra.mxu0 0.0
    %1884 = vmatprep.subr.mxu0 0.0
    %1885 = vmatpush1.xpose.msra.mxu0 0.0
    %1886 = vmatprep.subr.mxu0 0.0
    %1887 = vmatpush1.xpose.msra.mxu0 0.0
    %1888 = vmatprep.subr.mxu0 0.0
    %1889 = vmatpush1.xpose.msra.mxu0 0.0
    %1890 = vmatprep.subr.mxu0 0.0
    %1891 = vmatpush1.xpose.msra.mxu0 0.0
    %1892 = vmatprep.subr.mxu0 0.0
    %1893 = vmatpush1.xpose.msra.mxu0 0.0
    %1894 = vmatprep.subr.mxu0 0.0
    %1895 = vmatpush1.xpose.msra.mxu0 0.0
    %1896 = vmatprep.subr.mxu0 0.0
    %1897 = vmatpush1.xpose.msra.mxu0 0.0
    %1898 = vmatprep.subr.mxu0 0.0
    %1899 = vmatpush1.xpose.msra.mxu0 0.0
    %1900 = vmatprep.subr.mxu0 0.0
    %1901 = vmatpush1.xpose.msra.mxu0 0.0
    %1902 = vmatprep.subr.mxu0 0.0
    %1903 = vmatpush1.xpose.msra.mxu0 0.0
    %1904 = vmatprep.subr.mxu0 0.0
    %1905 = vmatpush1.xpose.msra.mxu0 0.0
    %1906 = vmatprep.subr.mxu0 0.0
    %1907 = vmatpush1.xpose.msra.mxu0 0.0
    %1908 = vmatprep.subr.mxu0 0.0
    %1909 = vmatpush1.xpose.msra.mxu0 %v1876
    %1910 = vmatprep.subr.mxu0 0.0
    %1911 = vmatpush2.xpose.msra.mxu0 0.0
    %1912 = vmatprep.subr.mxu0 0.0
    %1913 = vmatpush2.xpose.msra.mxu0 0.0
    %1914 = vmatprep.subr.mxu0 0.0
    %1915 = vmatpush2.xpose.msra.mxu0 0.0
    %1916 = vmatprep.subr.mxu0 0.0
    %1917 = vmatpush2.xpose.msra.mxu0 0.0
    %1918 = vmatprep.subr.mxu0 0.0
    %1919 = vmatpush2.xpose.msra.mxu0 0.0
    %1920 = vmatprep.subr.mxu0 0.0
    %1921 = vmatpush2.xpose.msra.mxu0 0.0
    %1922 = vmatprep.subr.mxu0 0.0
    %1923 = vmatpush2.xpose.msra.mxu0 0.0
    %1924 = vmatprep.subr.mxu0 0.0
    %1925 = vmatpush2.xpose.msra.mxu0 0.0
    %1926 = vmatprep.subr.mxu0 0.0
    %1927 = vmatpush2.xpose.msra.mxu0 0.0
    %1928 = vmatprep.subr.mxu0 0.0
    %1929 = vmatpush2.xpose.msra.mxu0 0.0
    %1930 = vmatprep.subr.mxu0 0.0
    %1931 = vmatpush2.xpose.msra.mxu0 0.0
    %1932 = vmatprep.subr.mxu0 0.0
    %1933 = vmatpush2.xpose.msra.mxu0 0.0
    %1934 = vmatprep.subr.mxu0 0.0
    %1935 = vmatpush2.xpose.msra.mxu0 0.0
    %1936 = vmatprep.subr.mxu0 0.0
    %1937 = vmatpush2.xpose.msra.mxu0 0.0
    %1938 = vmatprep.subr.mxu0 0.0
    %1939 = vmatpush2.xpose.msra.mxu0 0.0
    %1940 = vmatprep.subr.mxu0 0.0
    %1941 = vmatpush2.xpose.msra.mxu0 0.0
    %1942 = vmatprep.mubr.f32.mxu0 0.0
    %1943 = vmatmul.mubr.f32.gmra.mxu0 %v1724
    %v1944 = vpop.f32.mrf.mxu0
    %v1945 = vadd.f32 0.0, %v1944
    %v1946 = vpop.f32.mrf.mxu0
    %1947 = vdwg.mxu0
    %v1948 = vsel %vm589, %v1720, -inf
    %1949 = vmax.xlane.f32.xlu0 %v1948
    %v1950 = vpop.xlane.xlu0 %1949
    %v1951 = vsel %vm589, %v1799, -inf
    %1952 = vmax.xlane.f32.xlu0 %v1951
    %v1953 = vpop.xlane.xlu0 %1952
    %v1954 = vsel %vm900, %v1872, -inf
    %1955 = vmax.xlane.f32.xlu0 %v1954
    %v1956 = vpop.xlane.xlu0 %1955
    %v1957 = vsel %vm900, %v1945, -inf
    %1958 = vmax.xlane.f32.xlu0 %v1957
    %v1959 = vpop.xlane.xlu0 %1958
    %v1960 = vmax.f32 %v1950, %v1956
    %v1961 = vmax.f32 %v1953, %v1959
    %v1962 = vsub.f32 %v1720, %v1960
    %v1963 = vsub.f32 %v1799, %v1961
    %v1964 = vmul.f32 %v1962, 1.442695
    %v1965 = vpow.pop %v1964
    %v1966 = vmul.f32 %v1963, 1.442695
    %v1967 = vpow.pop %v1966
    %v1968 = vsub.f32 %v1872, %v1960
    %v1969 = vsub.f32 %v1945, %v1961
    %v1970 = vmul.f32 %v1968, 1.442695
    %v1971 = vpow.pop %v1970
    %v1972 = vmul.f32 %v1969, 1.442695
    %v1973 = vpow.pop %v1972
    %v1974 = vsel %vm589, %v1965, 0.0
    %1975 = vadd.xlane.f32.xlu0 %v1974
    %v1976 = vpop.xlane.xlu0 %1975
    %v1977 = vsel %vm589, %v1967, 0.0
    %1978 = vadd.xlane.f32.xlu0 %v1977
    %v1979 = vpop.xlane.xlu0 %1978
    %v1980 = vsel %vm900, %v1971, 0.0
    %1981 = vadd.xlane.f32.xlu0 %v1980
    %v1982 = vpop.xlane.xlu0 %1981
    %v1983 = vsel %vm900, %v1973, 0.0
    %1984 = vadd.xlane.f32.xlu0 %v1983
    %v1985 = vpop.xlane.xlu0 %1984
    %v1986 = vadd.f32 %v1976, %v1982
    %v1987 = vadd.f32 %v1979, %v1985
    %v1989 = vsel %vm900, %v1971, 0
    %1991 = vmatprep.subr.mxu0 0.0
    %1992 = vmatpush1.msra.mxu0 0.0
    %1993 = vmatprep.subr.mxu0 0.0
    %1994 = vmatpush1.msra.mxu0 0.0
    %1995 = vmatprep.subr.mxu0 0.0
    %1996 = vmatpush1.msra.mxu0 0.0
    %1997 = vmatprep.subr.mxu0 0.0
    %1998 = vmatpush1.msra.mxu0 0.0
    %1999 = vmatprep.subr.mxu0 0.0
    %2000 = vmatpush1.msra.mxu0 0.0
    %2001 = vmatprep.subr.mxu0 0.0
    %2002 = vmatpush1.msra.mxu0 0.0
    %2003 = vmatprep.subr.mxu0 0.0
    %2004 = vmatpush1.msra.mxu0 0.0
    %2005 = vmatprep.subr.mxu0 0.0
    %2006 = vmatpush1.msra.mxu0 0.0
    %2007 = vmatprep.subr.mxu0 0.0
    %2008 = vmatpush1.msra.mxu0 0.0
    %2009 = vmatprep.subr.mxu0 0.0
    %2010 = vmatpush1.msra.mxu0 0.0
    %2011 = vmatprep.subr.mxu0 0.0
    %2012 = vmatpush1.msra.mxu0 0.0
    %2013 = vmatprep.subr.mxu0 0.0
    %2014 = vmatpush1.msra.mxu0 0.0
    %2015 = vmatprep.subr.mxu0 0.0
    %2016 = vmatpush1.msra.mxu0 0.0
    %2017 = vmatprep.subr.mxu0 0.0
    %2018 = vmatpush1.msra.mxu0 0.0
    %2019 = vmatprep.subr.mxu0 0.0
    %2020 = vmatpush1.msra.mxu0 0.0
    %2021 = vmatprep.subr.mxu0 0.0
    %2022 = vmatpush1.msra.mxu0 %v1466
    %2023 = vmatprep.subr.mxu0 0.0
    %2024 = vmatpush2.msra.mxu0 0.0
    %2025 = vmatprep.subr.mxu0 0.0
    %2026 = vmatpush2.msra.mxu0 0.0
    %2027 = vmatprep.subr.mxu0 0.0
    %2028 = vmatpush2.msra.mxu0 0.0
    %2029 = vmatprep.subr.mxu0 0.0
    %2030 = vmatpush2.msra.mxu0 0.0
    %2031 = vmatprep.subr.mxu0 0.0
    %2032 = vmatpush2.msra.mxu0 0.0
    %2033 = vmatprep.subr.mxu0 0.0
    %2034 = vmatpush2.msra.mxu0 0.0
    %2035 = vmatprep.subr.mxu0 0.0
    %2036 = vmatpush2.msra.mxu0 0.0
    %2037 = vmatprep.subr.mxu0 0.0
    %2038 = vmatpush2.msra.mxu0 0.0
    %2039 = vmatprep.subr.mxu0 0.0
    %2040 = vmatpush2.msra.mxu0 0.0
    %2041 = vmatprep.subr.mxu0 0.0
    %2042 = vmatpush2.msra.mxu0 0.0
    %2043 = vmatprep.subr.mxu0 0.0
    %2044 = vmatpush2.msra.mxu0 0.0
    %2045 = vmatprep.subr.mxu0 0.0
    %2046 = vmatpush2.msra.mxu0 0.0
    %2047 = vmatprep.subr.mxu0 0.0
    %2048 = vmatpush2.msra.mxu0 0.0
    %2049 = vmatprep.subr.mxu0 0.0
    %2050 = vmatpush2.msra.mxu0 0.0
    %2051 = vmatprep.subr.mxu0 0.0
    %2052 = vmatpush2.msra.mxu0 0.0
    %2053 = vmatprep.subr.mxu0 0.0
    %2054 = vmatpush2.msra.mxu0 0.0
    %2055 = vmatprep.mubr.f32.mxu0 0.0
    %2056 = vmatmul.mubr.f32.gmra.mxu0 %v1989
    %v2057 = vpop.f32.mrf.mxu0
    %v2058 = vadd.f32 0.0, %v2057
    %v2059 = vpop.f32.mrf.mxu0
    %2060 = vdwg.mxu0
    %v2062 = vsel %vm900, %v1973, 0
    %2064 = vmatprep.subr.mxu0 0.0
    %2065 = vmatpush1.msra.mxu0 0.0
    %2066 = vmatprep.subr.mxu0 0.0
    %2067 = vmatpush1.msra.mxu0 0.0
    %2068 = vmatprep.subr.mxu0 0.0
    %2069 = vmatpush1.msra.mxu0 0.0
    %2070 = vmatprep.subr.mxu0 0.0
    %2071 = vmatpush1.msra.mxu0 0.0
    %2072 = vmatprep.subr.mxu0 0.0
    %2073 = vmatpush1.msra.mxu0 0.0
    %2074 = vmatprep.subr.mxu0 0.0
    %2075 = vmatpush1.msra.mxu0 0.0
    %2076 = vmatprep.subr.mxu0 0.0
    %2077 = vmatpush1.msra.mxu0 0.0
    %2078 = vmatprep.subr.mxu0 0.0
    %2079 = vmatpush1.msra.mxu0 0.0
    %2080 = vmatprep.subr.mxu0 0.0
    %2081 = vmatpush1.msra.mxu0 0.0
    %2082 = vmatprep.subr.mxu0 0.0
    %2083 = vmatpush1.msra.mxu0 0.0
    %2084 = vmatprep.subr.mxu0 0.0
    %2085 = vmatpush1.msra.mxu0 0.0
    %2086 = vmatprep.subr.mxu0 0.0
    %2087 = vmatpush1.msra.mxu0 0.0
    %2088 = vmatprep.subr.mxu0 0.0
    %2089 = vmatpush1.msra.mxu0 0.0
    %2090 = vmatprep.subr.mxu0 0.0
    %2091 = vmatpush1.msra.mxu0 0.0
    %2092 = vmatprep.subr.mxu0 0.0
    %2093 = vmatpush1.msra.mxu0 0.0
    %2094 = vmatprep.subr.mxu0 0.0
    %2095 = vmatpush1.msra.mxu0 %v1471
    %2096 = vmatprep.subr.mxu0 0.0
    %2097 = vmatpush2.msra.mxu0 0.0
    %2098 = vmatprep.subr.mxu0 0.0
    %2099 = vmatpush2.msra.mxu0 0.0
    %2100 = vmatprep.subr.mxu0 0.0
    %2101 = vmatpush2.msra.mxu0 0.0
    %2102 = vmatprep.subr.mxu0 0.0
    %2103 = vmatpush2.msra.mxu0 0.0
    %2104 = vmatprep.subr.mxu0 0.0
    %2105 = vmatpush2.msra.mxu0 0.0
    %2106 = vmatprep.subr.mxu0 0.0
    %2107 = vmatpush2.msra.mxu0 0.0
    %2108 = vmatprep.subr.mxu0 0.0
    %2109 = vmatpush2.msra.mxu0 0.0
    %2110 = vmatprep.subr.mxu0 0.0
    %2111 = vmatpush2.msra.mxu0 0.0
    %2112 = vmatprep.subr.mxu0 0.0
    %2113 = vmatpush2.msra.mxu0 0.0
    %2114 = vmatprep.subr.mxu0 0.0
    %2115 = vmatpush2.msra.mxu0 0.0
    %2116 = vmatprep.subr.mxu0 0.0
    %2117 = vmatpush2.msra.mxu0 0.0
    %2118 = vmatprep.subr.mxu0 0.0
    %2119 = vmatpush2.msra.mxu0 0.0
    %2120 = vmatprep.subr.mxu0 0.0
    %2121 = vmatpush2.msra.mxu0 0.0
    %2122 = vmatprep.subr.mxu0 0.0
    %2123 = vmatpush2.msra.mxu0 0.0
    %2124 = vmatprep.subr.mxu0 0.0
    %2125 = vmatpush2.msra.mxu0 0.0
    %2126 = vmatprep.subr.mxu0 0.0
    %2127 = vmatpush2.msra.mxu0 0.0
    %2128 = vmatprep.mubr.f32.mxu0 0.0
    %2129 = vmatmul.mubr.f32.gmra.mxu0 %v2062
    %v2130 = vpop.f32.mrf.mxu0
    %v2131 = vadd.f32 0.0, %v2130
    %v2132 = vpop.f32.mrf.mxu0
    %2133 = vdwg.mxu0
    %v2135 = vsel %vm589, %v1965, 0
    %2137 = vmatprep.subr.mxu0 0.0
    %2138 = vmatpush1.msra.mxu0 0.0
    %2139 = vmatprep.subr.mxu0 0.0
    %2140 = vmatpush1.msra.mxu0 0.0
    %2141 = vmatprep.subr.mxu0 0.0
    %2142 = vmatpush1.msra.mxu0 0.0
    %2143 = vmatprep.subr.mxu0 0.0
    %2144 = vmatpush1.msra.mxu0 0.0
    %2145 = vmatprep.subr.mxu0 0.0
    %2146 = vmatpush1.msra.mxu0 0.0
    %2147 = vmatprep.subr.mxu0 0.0
    %2148 = vmatpush1.msra.mxu0 0.0
    %2149 = vmatprep.subr.mxu0 0.0
    %2150 = vmatpush1.msra.mxu0 0.0
    %2151 = vmatprep.subr.mxu0 0.0
    %2152 = vmatpush1.msra.mxu0 0.0
    %2153 = vmatprep.subr.mxu0 0.0
    %2154 = vmatpush1.msra.mxu0 0.0
    %2155 = vmatprep.subr.mxu0 0.0
    %2156 = vmatpush1.msra.mxu0 0.0
    %2157 = vmatprep.subr.mxu0 0.0
    %2158 = vmatpush1.msra.mxu0 0.0
    %2159 = vmatprep.subr.mxu0 0.0
    %2160 = vmatpush1.msra.mxu0 0.0
    %2161 = vmatprep.subr.mxu0 0.0
    %2162 = vmatpush1.msra.mxu0 0.0
    %2163 = vmatprep.subr.mxu0 0.0
    %2164 = vmatpush1.msra.mxu0 0.0
    %2165 = vmatprep.subr.mxu0 0.0
    %2166 = vmatpush1.msra.mxu0 %v1631
    %2167 = vmatprep.subr.mxu0 0.0
    %2168 = vmatpush1.msra.mxu0 %v1626
    %2169 = vmatprep.subr.mxu0 0.0
    %2170 = vmatpush2.msra.mxu0 0.0
    %2171 = vmatprep.subr.mxu0 0.0
    %2172 = vmatpush2.msra.mxu0 0.0
    %2173 = vmatprep.subr.mxu0 0.0
    %2174 = vmatpush2.msra.mxu0 0.0
    %2175 = vmatprep.subr.mxu0 0.0
    %2176 = vmatpush2.msra.mxu0 0.0
    %2177 = vmatprep.subr.mxu0 0.0
    %2178 = vmatpush2.msra.mxu0 0.0
    %2179 = vmatprep.subr.mxu0 0.0
    %2180 = vmatpush2.msra.mxu0 0.0
    %2181 = vmatprep.subr.mxu0 0.0
    %2182 = vmatpush2.msra.mxu0 0.0
    %2183 = vmatprep.subr.mxu0 0.0
    %2184 = vmatpush2.msra.mxu0 0.0
    %2185 = vmatprep.subr.mxu0 0.0
    %2186 = vmatpush2.msra.mxu0 0.0
    %2187 = vmatprep.subr.mxu0 0.0
    %2188 = vmatpush2.msra.mxu0 0.0
    %2189 = vmatprep.subr.mxu0 0.0
    %2190 = vmatpush2.msra.mxu0 0.0
    %2191 = vmatprep.subr.mxu0 0.0
    %2192 = vmatpush2.msra.mxu0 0.0
    %2193 = vmatprep.subr.mxu0 0.0
    %2194 = vmatpush2.msra.mxu0 0.0
    %2195 = vmatprep.subr.mxu0 0.0
    %2196 = vmatpush2.msra.mxu0 0.0
    %2197 = vmatprep.subr.mxu0 0.0
    %2198 = vmatpush2.msra.mxu0 0.0
    %2199 = vmatprep.subr.mxu0 0.0
    %2200 = vmatpush2.msra.mxu0 0.0
    %2201 = vmatprep.mubr.f32.mxu0 0.0
    %2202 = vmatmul.mubr.f32.gmra.mxu0 %v2135
    %v2203 = vpop.f32.mrf.mxu0
    %v2204 = vadd.f32 %v2058, %v2203
    %v2205 = vpop.f32.mrf.mxu0
    %2206 = vdwg.mxu0
    %v2208 = vsel %vm589, %v1967, 0
    %2210 = vmatprep.subr.mxu0 0.0
    %2211 = vmatpush1.msra.mxu0 0.0
    %2212 = vmatprep.subr.mxu0 0.0
    %2213 = vmatpush1.msra.mxu0 0.0
    %2214 = vmatprep.subr.mxu0 0.0
    %2215 = vmatpush1.msra.mxu0 0.0
    %2216 = vmatprep.subr.mxu0 0.0
    %2217 = vmatpush1.msra.mxu0 0.0
    %2218 = vmatprep.subr.mxu0 0.0
    %2219 = vmatpush1.msra.mxu0 0.0
    %2220 = vmatprep.subr.mxu0 0.0
    %2221 = vmatpush1.msra.mxu0 0.0
    %2222 = vmatprep.subr.mxu0 0.0
    %2223 = vmatpush1.msra.mxu0 0.0
    %2224 = vmatprep.subr.mxu0 0.0
    %2225 = vmatpush1.msra.mxu0 0.0
    %2226 = vmatprep.subr.mxu0 0.0
    %2227 = vmatpush1.msra.mxu0 0.0
    %2228 = vmatprep.subr.mxu0 0.0
    %2229 = vmatpush1.msra.mxu0 0.0
    %2230 = vmatprep.subr.mxu0 0.0
    %2231 = vmatpush1.msra.mxu0 0.0
    %2232 = vmatprep.subr.mxu0 0.0
    %2233 = vmatpush1.msra.mxu0 0.0
    %2234 = vmatprep.subr.mxu0 0.0
    %2235 = vmatpush1.msra.mxu0 0.0
    %2236 = vmatprep.subr.mxu0 0.0
    %2237 = vmatpush1.msra.mxu0 0.0
    %2238 = vmatprep.subr.mxu0 0.0
    %2239 = vmatpush1.msra.mxu0 %v1641
    %2240 = vmatprep.subr.mxu0 0.0
    %2241 = vmatpush1.msra.mxu0 %v1636
    %2242 = vmatprep.subr.mxu0 0.0
    %2243 = vmatpush2.msra.mxu0 0.0
    %2244 = vmatprep.subr.mxu0 0.0
    %2245 = vmatpush2.msra.mxu0 0.0
    %2246 = vmatprep.subr.mxu0 0.0
    %2247 = vmatpush2.msra.mxu0 0.0
    %2248 = vmatprep.subr.mxu0 0.0
    %2249 = vmatpush2.msra.mxu0 0.0
    %2250 = vmatprep.subr.mxu0 0.0
    %2251 = vmatpush2.msra.mxu0 0.0
    %2252 = vmatprep.subr.mxu0 0.0
    %2253 = vmatpush2.msra.mxu0 0.0
    %2254 = vmatprep.subr.mxu0 0.0
    %2255 = vmatpush2.msra.mxu0 0.0
    %2256 = vmatprep.subr.mxu0 0.0
    %2257 = vmatpush2.msra.mxu0 0.0
    %2258 = vmatprep.subr.mxu0 0.0
    %2259 = vmatpush2.msra.mxu0 0.0
    %2260 = vmatprep.subr.mxu0 0.0
    %2261 = vmatpush2.msra.mxu0 0.0
    %2262 = vmatprep.subr.mxu0 0.0
    %2263 = vmatpush2.msra.mxu0 0.0
    %2264 = vmatprep.subr.mxu0 0.0
    %2265 = vmatpush2.msra.mxu0 0.0
    %2266 = vmatprep.subr.mxu0 0.0
    %2267 = vmatpush2.msra.mxu0 0.0
    %2268 = vmatprep.subr.mxu0 0.0
    %2269 = vmatpush2.msra.mxu0 0.0
    %2270 = vmatprep.subr.mxu0 0.0
    %2271 = vmatpush2.msra.mxu0 0.0
    %2272 = vmatprep.subr.mxu0 0.0
    %2273 = vmatpush2.msra.mxu0 0.0
    %2274 = vmatprep.mubr.f32.mxu0 0.0
    %2275 = vmatmul.mubr.f32.gmra.mxu0 %v2208
    %v2276 = vpop.f32.mrf.mxu0
    %v2277 = vadd.f32 %v2131, %v2276
    %v2278 = vpop.f32.mrf.mxu0
    %2279 = vdwg.mxu0
    %v2280 = vrcp.pop %v1986
    %v2281 = vrcp.pop %v1987
    %v2282 = vmul.f32 %v2204, %v2280
    %v2283 = vmul.f32 %v2277, %v2281
    %v2285 = vsel %vm589, %v2282, 0
    %v2288 = vsel %vm589, %v2283, 0
    %2290 = vmatprep.subr.mxu0 0.0
    %2291 = vmatpush1.msra.mxu0 0.0
    %2292 = vmatprep.subr.mxu0 0.0
    %2293 = vmatpush1.msra.mxu0 0.0
    %2294 = vmatprep.subr.mxu0 0.0
    %2295 = vmatpush1.msra.mxu0 0.0
    %2296 = vmatprep.subr.mxu0 0.0
    %2297 = vmatpush1.msra.mxu0 0.0
    %2298 = vmatprep.subr.mxu0 0.0
    %2299 = vmatpush1.msra.mxu0 0.0
    %2300 = vmatprep.subr.mxu0 0.0
    %2301 = vmatpush1.msra.mxu0 0.0
    %2302 = vmatprep.subr.mxu0 0.0
    %2303 = vmatpush1.msra.mxu0 0.0
    %2304 = vmatprep.subr.mxu0 0.0
    %2305 = vmatpush1.msra.mxu0 0.0
    %2306 = vmatprep.subr.mxu0 0.0
    %2307 = vmatpush1.msra.mxu0 0.0
    %2308 = vmatprep.subr.mxu0 0.0
    %2309 = vmatpush1.msra.mxu0 0.0
    %2310 = vmatprep.subr.mxu0 0.0
    %2311 = vmatpush1.msra.mxu0 0.0
    %2312 = vmatprep.subr.mxu0 0.0
    %2313 = vmatpush1.msra.mxu0 0.0
    %2314 = vmatprep.subr.mxu0 0.0
    %2315 = vmatpush1.msra.mxu0 0.0
    %2316 = vmatprep.subr.mxu0 0.0
    %2317 = vmatpush1.msra.mxu0 0.0
    %2318 = vmatprep.subr.mxu0 0.0
    %2319 = vmatpush1.msra.mxu0 %v1248
    %2320 = vmatprep.subr.mxu0 0.0
    %2321 = vmatpush1.msra.mxu0 %v1247
    %2322 = vmatprep.subr.mxu0 0.0
    %2323 = vmatpush2.msra.mxu0 0.0
    %2324 = vmatprep.subr.mxu0 0.0
    %2325 = vmatpush2.msra.mxu0 0.0
    %2326 = vmatprep.subr.mxu0 0.0
    %2327 = vmatpush2.msra.mxu0 0.0
    %2328 = vmatprep.subr.mxu0 0.0
    %2329 = vmatpush2.msra.mxu0 0.0
    %2330 = vmatprep.subr.mxu0 0.0
    %2331 = vmatpush2.msra.mxu0 0.0
    %2332 = vmatprep.subr.mxu0 0.0
    %2333 = vmatpush2.msra.mxu0 0.0
    %2334 = vmatprep.subr.mxu0 0.0
    %2335 = vmatpush2.msra.mxu0 0.0
    %2336 = vmatprep.subr.mxu0 0.0
    %2337 = vmatpush2.msra.mxu0 0.0
    %2338 = vmatprep.subr.mxu0 0.0
    %2339 = vmatpush2.msra.mxu0 0.0
    %2340 = vmatprep.subr.mxu0 0.0
    %2341 = vmatpush2.msra.mxu0 0.0
    %2342 = vmatprep.subr.mxu0 0.0
    %2343 = vmatpush2.msra.mxu0 0.0
    %2344 = vmatprep.subr.mxu0 0.0
    %2345 = vmatpush2.msra.mxu0 0.0
    %2346 = vmatprep.subr.mxu0 0.0
    %2347 = vmatpush2.msra.mxu0 0.0
    %2348 = vmatprep.subr.mxu0 0.0
    %2349 = vmatpush2.msra.mxu0 0.0
    %2350 = vmatprep.subr.mxu0 0.0
    %2351 = vmatpush2.msra.mxu0 0.0
    %2352 = vmatprep.subr.mxu0 0.0
    %2353 = vmatpush2.msra.mxu0 0.0
    %2354 = vmatprep.mubr.f32.mxu0 0.0
    %2355 = vmatmul.mubr.f32.gmra.mxu0 %v2285
    %v2356 = vpop.f32.mrf.mxu0
    %v2357 = vadd.f32 0.0, %v2356
    %v2358 = vpop.f32.mrf.mxu0
    %2359 = vmatprep.mubr.f32.mxu0 0.0
    %2360 = vmatmul.mubr.f32.gmra.mxu0 %v2288
    %v2361 = vpop.f32.mrf.mxu0
    %v2362 = vadd.f32 0.0, %v2361
    %v2363 = vpop.f32.mrf.mxu0
    %2364 = vdwg.mxu0
    %v2366 = vsel %vm589, %v1229, 0
    %v2369 = vsel %vm589, %v1230, 0
    %2371 = vmatprep.subr.mxu0 0.0
    %2372 = vmatpush1.msra.mxu0 0.0
    %2373 = vmatprep.subr.mxu0 0.0
    %2374 = vmatpush1.msra.mxu0 0.0
    %2375 = vmatprep.subr.mxu0 0.0
    %2376 = vmatpush1.msra.mxu0 0.0
    %2377 = vmatprep.subr.mxu0 0.0
    %2378 = vmatpush1.msra.mxu0 0.0
    %2379 = vmatprep.subr.mxu0 0.0
    %2380 = vmatpush1.msra.mxu0 0.0
    %2381 = vmatprep.subr.mxu0 0.0
    %2382 = vmatpush1.msra.mxu0 0.0
    %2383 = vmatprep.subr.mxu0 0.0
    %2384 = vmatpush1.msra.mxu0 0.0
    %2385 = vmatprep.subr.mxu0 0.0
    %2386 = vmatpush1.msra.mxu0 0.0
    %2387 = vmatprep.subr.mxu0 0.0
    %2388 = vmatpush1.msra.mxu0 0.0
    %2389 = vmatprep.subr.mxu0 0.0
    %2390 = vmatpush1.msra.mxu0 0.0
    %2391 = vmatprep.subr.mxu0 0.0
    %2392 = vmatpush1.msra.mxu0 0.0
    %2393 = vmatprep.subr.mxu0 0.0
    %2394 = vmatpush1.msra.mxu0 0.0
    %2395 = vmatprep.subr.mxu0 0.0
    %2396 = vmatpush1.msra.mxu0 0.0
    %2397 = vmatprep.subr.mxu0 0.0
    %2398 = vmatpush1.msra.mxu0 0.0
    %2399 = vmatprep.subr.mxu0 0.0
    %2400 = vmatpush1.msra.mxu0 %v175
    %2401 = vmatprep.subr.mxu0 0.0
    %2402 = vmatpush1.msra.mxu0 %v174
    %2403 = vmatprep.subr.mxu0 0.0
    %2404 = vmatpush2.msra.mxu0 0.0
    %2405 = vmatprep.subr.mxu0 0.0
    %2406 = vmatpush2.msra.mxu0 0.0
    %2407 = vmatprep.subr.mxu0 0.0
    %2408 = vmatpush2.msra.mxu0 0.0
    %2409 = vmatprep.subr.mxu0 0.0
    %2410 = vmatpush2.msra.mxu0 0.0
    %2411 = vmatprep.subr.mxu0 0.0
    %2412 = vmatpush2.msra.mxu0 0.0
    %2413 = vmatprep.subr.mxu0 0.0
    %2414 = vmatpush2.msra.mxu0 0.0
    %2415 = vmatprep.subr.mxu0 0.0
    %2416 = vmatpush2.msra.mxu0 0.0
    %2417 = vmatprep.subr.mxu0 0.0
    %2418 = vmatpush2.msra.mxu0 0.0
    %2419 = vmatprep.subr.mxu0 0.0
    %2420 = vmatpush2.msra.mxu0 0.0
    %2421 = vmatprep.subr.mxu0 0.0
    %2422 = vmatpush2.msra.mxu0 0.0
    %2423 = vmatprep.subr.mxu0 0.0
    %2424 = vmatpush2.msra.mxu0 0.0
    %2425 = vmatprep.subr.mxu0 0.0
    %2426 = vmatpush2.msra.mxu0 0.0
    %2427 = vmatprep.subr.mxu0 0.0
    %2428 = vmatpush2.msra.mxu0 0.0
    %2429 = vmatprep.subr.mxu0 0.0
    %2430 = vmatpush2.msra.mxu0 0.0
    %2431 = vmatprep.subr.mxu0 0.0
    %2432 = vmatpush2.msra.mxu0 0.0
    %2433 = vmatprep.subr.mxu0 0.0
    %2434 = vmatpush2.msra.mxu0 0.0
    %2435 = vmatprep.mubr.f32.mxu0 0.0
    %2436 = vmatmul.mubr.f32.gmra.mxu0 %v2366
    %v2437 = vpop.f32.mrf.mxu0
    %v2438 = vadd.f32 %v2357, %v2437
    %v2439 = vpop.f32.mrf.mxu0
    %2440 = vmatprep.mubr.f32.mxu0 0.0
    %2441 = vmatmul.mubr.f32.gmra.mxu0 %v2369
    %v2442 = vpop.f32.mrf.mxu0
    %v2443 = vadd.f32 %v2362, %v2442
    %v2444 = vpop.f32.mrf.mxu0
    %2445 = vdwg.mxu0
    %2446 = vst.msk [vmem:[#allocation2] sm:$0xff] %vm42, %v2438
    %2447 = vst.msk [vmem:[#allocation2 + $0x8] sm:$0xff] %vm42, %v2443
    // Predicated region
    $region42: #{tpu_custom_call.1} parent=1 // pred_check
      _
    $region43: #{tpu_custom_call.1} parent=1 // pred_check_branch
      %2449 = sbr.rel (0) target = $region45
    $region44: #{tpu_custom_call.1} parent=1 // pred_region
      %s2451 = ssub.s32 256, 256
      %2452 = vsyncadd [#allocation3], %s2451
      %s2453 = sshll.u32 [#allocation2], 4
      %s2454 = int_to_ptr.vmem [resolvable:$true] %s2453
      %2459 = dma.vmem_to_hbm [thread:$0]  %s2454, 256, %s10, [#allocation3], 128, 128, 8
    $region45: #{tpu_custom_call.1} parent=1 // pred_fallthru
      _
    // Predicated region
    $region46: #{tpu_custom_call.1} parent=1 // pred_check
      _
    $region47: #{tpu_custom_call.1} parent=1 // pred_check_branch
      %2461 = sbr.rel (0) target = $region49
    $region48: #{tpu_custom_call.1} parent=1 // pred_region
      %2462 = dma.done [#allocation3], 256
    $region49: #{tpu_custom_call.1} parent=1 // pred_fallthru
      _
    %2463 = vsyncpa [#allocation3], 1

</llo_original>
